<compile_context>
chip_gen: v5e
topology: v5e:2x2
jax: 0.10.0
libtpu: 0.0.40
codegen_flags: <defaults>
</compile_context>

<pallas_src>
import math
import jax
import jax.numpy as jnp
from jax.experimental import pallas as pl
from jax.experimental.pallas import tpu as pltpu

# --- small, shape-consistent stand-in config for DINOv2 ViT + Linear head ---
IMG = 28            # img_size (small stand-in for 518)
PATCH = 14          # patch_size (as in init_args)
IN_CH = 3
DIM = 32            # hidden_size
HEADS = 4
HEAD_DIM = DIM // HEADS
MLP = 4 * DIM       # ffn_layer='mlp', ratio 4  (= 128 here)
DEPTH = 2
NUM_CLASSES = 3     # len(class_names) (soft_label=False)
LN_EPS = 1e-6
N_PATCH = (IMG // PATCH) ** 2
N_TOK = N_PATCH + 1                       # + cls token
N_PAD = 8                                 # tokens padded to sublane tile
K_RAW = IN_CH * PATCH * PATCH             # 588
KPAD = ((K_RAW + 127) // 128) * 128       # 640, lane-aligned contraction dim
NCLS_PAD = 128                            # lane-dense head output slab
CONST_W = 128                             # width of the packed consts slab

ACT_DTYPE = jnp.bfloat16                  # set to jnp.float32 on v5e

assert MLP <= CONST_W and 3 * DIM <= CONST_W and NCLS_PAD == CONST_W

# packed consts slab layout (one f32 (NROWS, 128) operand)
#   global rows
_G_TOKB = 0                    # rows 0..N_PAD-1: cls/pos/patch-bias token bias
_G_NORMG = 8                   # final LayerNorm gamma
_G_NORMB = 9                   # final LayerNorm beta
_G_HEADB = 10                  # classifier head bias (full 128 lanes)
GROWS = 16
#   per-depth rows (VROWS each, at GROWS + d*VROWS)
_V_LN1G, _V_LN1B, _V_QKVB, _V_PROJB, _V_LS1, _V_LN2G, _V_LN2B, _V_FC1B, \
    _V_FC2B, _V_LS2 = range(10)
VROWS = 16
NROWS = GROWS + DEPTH * VROWS


def _const_spec(shape):
    nd = len(shape)
    return pl.BlockSpec(shape, lambda b, _nd=nd: (0,) * _nd)


# ------------------------- helpers used inside the kernel -------------------------
def _ln(x, g, b):
    mu = jnp.mean(x, axis=-1, keepdims=True)
    var = jnp.mean((x - mu) ** 2, axis=-1, keepdims=True)
    return (x - mu) * jax.lax.rsqrt(var + LN_EPS) * g + b


def _gelu(x):
    # TODO(synk): tanh-approximate GELU; PyTorch nn.GELU default is the exact erf form.
    c = math.sqrt(2.0 / math.pi)
    return 0.5 * x * (1.0 + jnp.tanh(c * (x + 0.044715 * x * x * x)))


# ------------------------- single fused forward kernel -------------------------
def _fused_forward_kernel(patches_ref, patch_w_ref, qkvw_ref, pw_ref,
                          fc1w_ref, fc2w_ref, headw_ref, consts_ref, o_ref):
    TB = patches_ref.shape[0]         # samples per grid step
    R = TB * N_PAD                    # padded token rows in this step

    consts = consts_ref[...]          # (NROWS, 128) f32

    def crow(r, width=DIM):
        return consts[r:r + 1, 0:width]

    tok_bias = consts[_G_TOKB:_G_TOKB + N_PAD, 0:DIM]      # (N_PAD, DIM)
    norm_g, norm_b = crow(_G_NORMG), crow(_G_NORMB)
    head_b = consts[_G_HEADB:_G_HEADB + 1, :]              # (1, 128)

    # --- patch embedding + prepare_tokens (cls token + pos embed, pre-folded) ---
    patches = patches_ref[...].reshape(R, KPAD)            # cls/pad rows are zero
    tok = jnp.dot(patches, patch_w_ref[...], preferred_element_type=jnp.float32)
    x = (tok.reshape(TB, N_PAD, DIM) + tok_bias[None, :, :]).reshape(R, DIM)

    # additive mask for padded key tokens (rows N_TOK..N_PAD-1 of each sample)
    kidx = jax.lax.broadcasted_iota(jnp.int32, (1, 1, N_PAD), 2)
    key_mask = jnp.where(kidx < N_TOK, 0.0, -1e30)

    # --- transformer blocks (statically unrolled at stand-in depth) ---
    for d in range(DEPTH):
        base = GROWS + d * VROWS
        ln1_g, ln1_b = crow(base + _V_LN1G), crow(base + _V_LN1B)
        qkv_b = consts[base + _V_QKVB:base + _V_QKVB + 1, 0:3 * DIM]
        proj_b, ls1 = crow(base + _V_PROJB), crow(base + _V_LS1)
        ln2_g, ln2_b = crow(base + _V_LN2G), crow(base + _V_LN2B)
        fc1_b = consts[base + _V_FC1B:base + _V_FC1B + 1, 0:MLP]
        fc2_b, ls2 = crow(base + _V_FC2B), crow(base + _V_LS2)

        # --- multi-head self-attention: one fused QKV matmul per block ---
        h = _ln(x, ln1_g, ln1_b).astype(ACT_DTYPE)
        qkv = jnp.dot(h, qkvw_ref[d],
                      preferred_element_type=jnp.float32) + qkv_b   # (R, 3*DIM)

        def split_heads(t0):
            # contiguous lane slices per head, heads become a leading batch dim
            t = jnp.stack([t0[:, hh * HEAD_DIM:(hh + 1) * HEAD_DIM]
                           for hh in range(HEADS)], axis=0)          # (HEADS, R, HD)
            return t.reshape(HEADS * TB, N_PAD, HEAD_DIM).astype(ACT_DTYPE)

        q = split_heads(qkv[:, 0:DIM])        # scale pre-folded into qkvw / qkv_b
        k = split_heads(qkv[:, DIM:2 * DIM])
        v = split_heads(qkv[:, 2 * DIM:3 * DIM])

        s = jnp.einsum('gqd,gkd->gqk', q, k,
                       preferred_element_type=jnp.float32)           # (G, N, N)
        s = s + key_mask
        s = s - jnp.max(s, axis=-1, keepdims=True)
        p = jnp.exp(s)
        p = p * pl.reciprocal(jnp.sum(p, axis=-1, keepdims=True), approx=True)
        o = jnp.einsum('gqk,gkd->gqd', p.astype(ACT_DTYPE), v,
                       preferred_element_type=jnp.float32)           # (G, N, HD)

        # lane-concat heads back to (R, DIM), then one projection matmul
        o4 = o.reshape(HEADS, TB, N_PAD, HEAD_DIM)
        o_cat = jnp.concatenate([o4[hh] for hh in range(HEADS)], axis=-1)
        o_cat = o_cat.reshape(R, DIM).astype(ACT_DTYPE)
        attn = jnp.dot(o_cat, pw_ref[d],
                       preferred_element_type=jnp.float32) + proj_b
        x = x + ls1 * attn                                    # LayerScale residual

        # --- MLP ---
        h2 = _ln(x, ln2_g, ln2_b).astype(ACT_DTYPE)
        h2 = jnp.dot(h2, fc1w_ref[d], preferred_element_type=jnp.float32) + fc1_b
        h2 = _gelu(h2).astype(ACT_DTYPE)
        h2 = jnp.dot(h2, fc2w_ref[d], preferred_element_type=jnp.float32) + fc2_b
        x = x + ls2 * h2

    # --- final norm on cls rows (aligned row-0-of-8 slice) + classification head ---
    cls = x.reshape(TB, N_PAD, DIM)[:, 0:1, :].reshape(TB, DIM)
    cls = _ln(cls, norm_g, norm_b).astype(ACT_DTYPE)
    logits = jnp.dot(cls, headw_ref[...],
                     preferred_element_type=jnp.float32) + head_b    # (TB, 128)
    o_ref[...] = logits.reshape(TB, 1, NCLS_PAD).astype(o_ref.dtype)


# ------------------------- full forward (Classifier.forward) -------------------------
def classifier_forward(x, params, batch_tile=1):
    B, C, H, W = x.shape
    gh, gw = H // PATCH, W // PATCH
    assert gh * gw == N_PATCH and C * PATCH * PATCH == K_RAW
    assert B % batch_tile == 0
    TB = batch_tile

    # unfold NCHW image into patch rows (conv stride == kernel == patch); prepend
    # a zero cls row, append zero pad-token rows (-> N_PAD tokens / sample), and
    # pad the contraction dim to a lane-aligned KPAD.
    patches = x.reshape(B, C, gh, PATCH, gw, PATCH)
    patches = patches.transpose(0, 2, 4, 1, 3, 5).reshape(B, N_PATCH, K_RAW)
    patches = jnp.pad(patches, ((0, 0), (1, N_PAD - N_TOK), (0, KPAD - K_RAW)))
    patches = patches.astype(ACT_DTYPE)

    in_specs = [
        pl.BlockSpec((TB, N_PAD, KPAD), lambda b: (b, 0, 0)),
        _const_spec(params["patch_w"].shape),
        _const_spec(params["qkvw"].shape),
        _const_spec(params["pw"].shape),
        _const_spec(params["fc1w"].shape),
        _const_spec(params["fc2w"].shape),
        _const_spec(params["headw"].shape),
        _const_spec(params["consts"].shape),
    ]
    out = pl.pallas_call(
        _fused_forward_kernel,
        out_shape=jax.ShapeDtypeStruct((B, 1, NCLS_PAD), jnp.float32),
        grid=(B // TB,),
        in_specs=in_specs,
        out_specs=pl.BlockSpec((TB, 1, NCLS_PAD), lambda b: (b, 0, 0)),
        compiler_params=pltpu.CompilerParams(dimension_semantics=("parallel",)),
    )(patches, params["patch_w"], params["qkvw"], params["pw"],
      params["fc1w"], params["fc2w"], params["headw"], params["consts"])
    return out.reshape(B, NCLS_PAD)[:, :NUM_CLASSES]


# ------------------------- deterministic parameter init + packing -------------------------
def init_params(key):
    keys = iter(jax.random.split(key, 64))

    def nrm(shape, scale=0.02):
        return scale * jax.random.normal(next(keys), shape, dtype=jnp.float32)

    attn_scale = HEAD_DIM ** -0.5
    ones_d = jnp.ones((DIM,), jnp.float32)
    zeros_d = jnp.zeros((DIM,), jnp.float32)

    patch_w = jnp.zeros((KPAD, DIM), jnp.float32).at[:K_RAW].set(nrm((K_RAW, DIM)))
    patch_b = zeros_d
    cls_tok = nrm((DIM,))
    pos = nrm((N_TOK, DIM))

    # fused QKV weights; attention scale pre-folded into the q columns / q bias
    qkvw = nrm((DEPTH, DIM, 3 * DIM))
    qkvw = qkvw.at[:, :, 0:DIM].multiply(attn_scale)
    qkv_b = jnp.zeros((DEPTH, 3 * DIM), jnp.float32)
    qkv_b = qkv_b.at[:, 0:DIM].multiply(attn_scale)

    pw = nrm((DEPTH, DIM, DIM))                 # head-concat output projection
    fc1w = nrm((DEPTH, DIM, MLP))
    fc1_b = jnp.zeros((DEPTH, MLP), jnp.float32)
    fc2w = nrm((DEPTH, MLP, DIM))
    fc2_b = jnp.zeros((DEPTH, DIM), jnp.float32)

    headw = jnp.zeros((DIM, NCLS_PAD), jnp.float32)
    headw = headw.at[:, :NUM_CLASSES].set(nrm((DIM, NUM_CLASSES)))
    head_b = jnp.zeros((NCLS_PAD,), jnp.float32)

    # pack every small vector into one (NROWS, 128) f32 slab (single startup DMA)
    consts = jnp.zeros((NROWS, CONST_W), jnp.float32)
    tok_bias = jnp.concatenate(
        [(cls_tok + pos[0])[None, :],
         patch_b[None, :] + pos[1:N_TOK],
         jnp.zeros((N_PAD - N_TOK, DIM), jnp.float32)], axis=0)     # (N_PAD, DIM)
    consts = consts.at[_G_TOKB:_G_TOKB + N_PAD, 0:DIM].set(tok_bias)
    consts = consts.at[_G_NORMG, 0:DIM].set(ones_d)
    consts = consts.at[_G_NORMB, 0:DIM].set(zeros_d)
    consts = consts.at[_G_HEADB, :].set(head_b)
    for d in range(DEPTH):
        base = GROWS + d * VROWS
        consts = consts.at[base + _V_LN1G, 0:DIM].set(ones_d)
        consts = consts.at[base + _V_LN1B, 0:DIM].set(zeros_d)
        consts = consts.at[base + _V_QKVB, 0:3 * DIM].set(qkv_b[d])
        consts = consts.at[base + _V_PROJB, 0:DIM].set(zeros_d)
        consts = consts.at[base + _V_LS1, 0:DIM].set(ones_d)    # LayerScale init_values=1.0
        consts = consts.at[base + _V_LN2G, 0:DIM].set(ones_d)
        consts = consts.at[base + _V_LN2B, 0:DIM].set(zeros_d)
        consts = consts.at[base + _V_FC1B, 0:MLP].set(fc1_b[d])
        consts = consts.at[base + _V_FC2B, 0:DIM].set(fc2_b[d])
        consts = consts.at[base + _V_LS2, 0:DIM].set(ones_d)

    return {
        "patch_w": patch_w.astype(ACT_DTYPE),
        "qkvw": qkvw.astype(ACT_DTYPE),
        "pw": pw.astype(ACT_DTYPE),
        "fc1w": fc1w.astype(ACT_DTYPE),
        "fc2w": fc2w.astype(ACT_DTYPE),
        "headw": headw.astype(ACT_DTYPE),
        "consts": consts,
    }


if __name__ == "__main__":
    key = jax.random.PRNGKey(0)
    pkey, xkey = jax.random.split(key)
    params = init_params(pkey)
    x = jax.random.normal(xkey, (2, IN_CH, IMG, IMG), dtype=jnp.float32)
    forward = jax.jit(classifier_forward)
    logits = forward(x, params)
    jax.block_until_ready(logits)
    assert logits.shape == (2, NUM_CLASSES)
    print("KERNEL_OK")
</pallas_src>

<mosaic_0001>
module attributes {stable_mosaic.version = 11 : i64} {
  func.func @_fused_forward_kernel(%arg0: i32, %arg1: memref<1x8x640xbf16, #tpu.memory_space<vmem>>, %arg2: memref<640x32xbf16, #tpu.memory_space<vmem>>, %arg3: memref<2x32x96xbf16, #tpu.memory_space<vmem>>, %arg4: memref<2x32x32xbf16, #tpu.memory_space<vmem>>, %arg5: memref<2x32x128xbf16, #tpu.memory_space<vmem>>, %arg6: memref<2x128x32xbf16, #tpu.memory_space<vmem>>, %arg7: memref<32x128xbf16, #tpu.memory_space<vmem>>, %arg8: memref<48x128xf32, #tpu.memory_space<vmem>>, %arg9: memref<1x1x128xf32, #tpu.memory_space<vmem>>) attributes {dimension_semantics = [#tpu.dimension_semantics<parallel>], iteration_bounds = array<i64: 2>, scalar_prefetch = 0 : i64, scratch_operands = 0 : i64, tpu.core_type = #tpu.core_type<tc>, window_params = [{transform_indices = @transform_0, window_bounds = array<i64: 1, 8, 640>}, {pipeline_mode = #tpu.pipeline_mode<synchronous>, transform_indices = @transform_1, window_bounds = array<i64: 640, 32>}, {pipeline_mode = #tpu.pipeline_mode<synchronous>, transform_indices = @transform_2, window_bounds = array<i64: 2, 32, 96>}, {pipeline_mode = #tpu.pipeline_mode<synchronous>, transform_indices = @transform_3, window_bounds = array<i64: 2, 32, 32>}, {pipeline_mode = #tpu.pipeline_mode<synchronous>, transform_indices = @transform_4, window_bounds = array<i64: 2, 32, 128>}, {pipeline_mode = #tpu.pipeline_mode<synchronous>, transform_indices = @transform_5, window_bounds = array<i64: 2, 128, 32>}, {pipeline_mode = #tpu.pipeline_mode<synchronous>, transform_indices = @transform_6, window_bounds = array<i64: 32, 128>}, {pipeline_mode = #tpu.pipeline_mode<synchronous>, transform_indices = @transform_7, window_bounds = array<i64: 48, 128>}, {transform_indices = @transform_8, window_bounds = array<i64: 1, 1, 128>}]} {
    %c0 = arith.constant 0 : index
    %c0_0 = arith.constant 0 : index
    %0 = vector.load %arg8[%c0, %c0_0] : memref<48x128xf32, #tpu.memory_space<vmem>>, vector<48x128xf32>
    %1 = vector.extract_strided_slice %0 {offsets = [0, 0], sizes = [8, 32], strides = [1, 1]} : vector<48x128xf32> to vector<8x32xf32>
    %2 = vector.extract_strided_slice %0 {offsets = [8, 0], sizes = [1, 32], strides = [1, 1]} : vector<48x128xf32> to vector<1x32xf32>
    %3 = vector.extract_strided_slice %0 {offsets = [9, 0], sizes = [1, 32], strides = [1, 1]} : vector<48x128xf32> to vector<1x32xf32>
    %4 = vector.extract_strided_slice %0 {offsets = [10, 0], sizes = [1, 128], strides = [1, 1]} : vector<48x128xf32> to vector<1x128xf32>
    %c0_1 = arith.constant 0 : index
    %c0_2 = arith.constant 0 : index
    %c0_3 = arith.constant 0 : index
    %5 = vector.load %arg1[%c0_1, %c0_2, %c0_3] : memref<1x8x640xbf16, #tpu.memory_space<vmem>>, vector<1x8x640xbf16>
    %6 = vector.shape_cast %5 : vector<1x8x640xbf16> to vector<8x640xbf16>
    %c0_4 = arith.constant 0 : index
    %c0_5 = arith.constant 0 : index
    %7 = vector.load %arg2[%c0_4, %c0_5] : memref<640x32xbf16, #tpu.memory_space<vmem>>, vector<640x32xbf16>
    %cst = arith.constant dense<0.000000e+00> : vector<8x32xf32>
    %8 = tpu.matmul %6, %7, %cst {dimension_numbers = #tpu.dot_dimension_numbers<[1], [0], [0], [1], [0, 0, 1, 1], [], []>} : vector<8x640xbf16>, vector<640x32xbf16>, vector<8x32xf32> -> vector<8x32xf32>
    %9 = vector.shape_cast %8 : vector<8x32xf32> to vector<1x8x32xf32>
    %10 = vector.shape_cast %1 : vector<8x32xf32> to vector<1x8x32xf32>
    %11 = arith.addf %9, %10 : vector<1x8x32xf32>
    %12 = vector.shape_cast %11 : vector<1x8x32xf32> to vector<8x32xf32>
    %13 = tpu.iota {dimensions = array<i32: 2>} : vector<1x1x8xi32>
    %c5_i32 = arith.constant 5 : i32
    %14 = vector.broadcast %c5_i32 : i32 to vector<1x1x8xi32>
    %15 = arith.cmpi slt, %13, %14 : vector<1x1x8xi32>
    %cst_6 = arith.constant 0.000000e+00 : f32
    %cst_7 = arith.constant -1.000000e+30 : f32
    %16 = vector.broadcast %cst_6 : f32 to vector<1x1x8xf32>
    %17 = vector.broadcast %cst_7 : f32 to vector<1x1x8xf32>
    %18 = arith.select %15, %16, %17 : vector<1x1x8xi1>, vector<1x1x8xf32>
    %19 = vector.extract_strided_slice %0 {offsets = [16, 0], sizes = [1, 32], strides = [1, 1]} : vector<48x128xf32> to vector<1x32xf32>
    %20 = vector.extract_strided_slice %0 {offsets = [17, 0], sizes = [1, 32], strides = [1, 1]} : vector<48x128xf32> to vector<1x32xf32>
    %21 = vector.extract_strided_slice %0 {offsets = [18, 0], sizes = [1, 96], strides = [1, 1]} : vector<48x128xf32> to vector<1x96xf32>
    %22 = vector.extract_strided_slice %0 {offsets = [19, 0], sizes = [1, 32], strides = [1, 1]} : vector<48x128xf32> to vector<1x32xf32>
    %23 = vector.extract_strided_slice %0 {offsets = [20, 0], sizes = [1, 32], strides = [1, 1]} : vector<48x128xf32> to vector<1x32xf32>
    %24 = vector.extract_strided_slice %0 {offsets = [21, 0], sizes = [1, 32], strides = [1, 1]} : vector<48x128xf32> to vector<1x32xf32>
    %25 = vector.extract_strided_slice %0 {offsets = [22, 0], sizes = [1, 32], strides = [1, 1]} : vector<48x128xf32> to vector<1x32xf32>
    %26 = vector.extract_strided_slice %0 {offsets = [23, 0], sizes = [1, 128], strides = [1, 1]} : vector<48x128xf32> to vector<1x128xf32>
    %27 = vector.extract_strided_slice %0 {offsets = [24, 0], sizes = [1, 32], strides = [1, 1]} : vector<48x128xf32> to vector<1x32xf32>
    %28 = vector.extract_strided_slice %0 {offsets = [25, 0], sizes = [1, 32], strides = [1, 1]} : vector<48x128xf32> to vector<1x32xf32>
    %cst_8 = arith.constant dense<0.000000e+00> : vector<8xf32>
    %29 = vector.multi_reduction <add>, %12, %cst_8 [1] : vector<8x32xf32> to vector<8xf32>
    %30 = vector.shape_cast %29 : vector<8xf32> to vector<8x1xf32>
    %cst_9 = arith.constant 3.200000e+01 : f32
    %31 = vector.broadcast %cst_9 : f32 to vector<8x1xf32>
    %32 = arith.divf %30, %31 : vector<8x1xf32>
    %33 = vector.broadcast %32 : vector<8x1xf32> to vector<8x32xf32>
    %34 = arith.subf %12, %33 : vector<8x32xf32>
    %35 = arith.mulf %34, %34 : vector<8x32xf32>
    %cst_10 = arith.constant dense<0.000000e+00> : vector<8xf32>
    %36 = vector.multi_reduction <add>, %35, %cst_10 [1] : vector<8x32xf32> to vector<8xf32>
    %37 = vector.shape_cast %36 : vector<8xf32> to vector<8x1xf32>
    %cst_11 = arith.constant 3.200000e+01 : f32
    %38 = vector.broadcast %cst_11 : f32 to vector<8x1xf32>
    %39 = arith.divf %37, %38 : vector<8x1xf32>
    %40 = vector.broadcast %32 : vector<8x1xf32> to vector<8x32xf32>
    %41 = arith.subf %12, %40 : vector<8x32xf32>
    %cst_12 = arith.constant 9.99999997E-7 : f32
    %42 = vector.broadcast %cst_12 : f32 to vector<8x1xf32>
    %43 = arith.addf %39, %42 : vector<8x1xf32>
    %44 = math.rsqrt %43 : vector<8x1xf32>
    %45 = vector.broadcast %44 : vector<8x1xf32> to vector<8x32xf32>
    %46 = arith.mulf %41, %45 : vector<8x32xf32>
    %47 = vector.broadcast %19 : vector<1x32xf32> to vector<8x32xf32>
    %48 = arith.mulf %46, %47 : vector<8x32xf32>
    %49 = vector.broadcast %20 : vector<1x32xf32> to vector<8x32xf32>
    %50 = arith.addf %48, %49 : vector<8x32xf32>
    %51 = arith.truncf %50 : vector<8x32xf32> to vector<8x32xbf16>
    %c0_13 = arith.constant 0 : index
    %c0_14 = arith.constant 0 : index
    %c0_15 = arith.constant 0 : index
    %52 = vector.load %arg3[%c0_13, %c0_14, %c0_15] : memref<2x32x96xbf16, #tpu.memory_space<vmem>>, vector<1x32x96xbf16>
    %53 = vector.shape_cast %52 : vector<1x32x96xbf16> to vector<32x96xbf16>
    %cst_16 = arith.constant dense<0.000000e+00> : vector<8x96xf32>
    %54 = tpu.matmul %51, %53, %cst_16 {dimension_numbers = #tpu.dot_dimension_numbers<[1], [0], [0], [1], [0, 0, 1, 1], [], []>} : vector<8x32xbf16>, vector<32x96xbf16>, vector<8x96xf32> -> vector<8x96xf32>
    %55 = vector.broadcast %21 : vector<1x96xf32> to vector<8x96xf32>
    %56 = arith.addf %54, %55 : vector<8x96xf32>
    %57 = vector.extract_strided_slice %56 {offsets = [0, 0], sizes = [8, 32], strides = [1, 1]} : vector<8x96xf32> to vector<8x32xf32>
    %58 = vector.extract_strided_slice %57 {offsets = [0, 0], sizes = [8, 8], strides = [1, 1]} : vector<8x32xf32> to vector<8x8xf32>
    %59 = vector.extract_strided_slice %57 {offsets = [0, 8], sizes = [8, 8], strides = [1, 1]} : vector<8x32xf32> to vector<8x8xf32>
    %60 = vector.extract_strided_slice %57 {offsets = [0, 16], sizes = [8, 8], strides = [1, 1]} : vector<8x32xf32> to vector<8x8xf32>
    %61 = vector.extract_strided_slice %57 {offsets = [0, 24], sizes = [8, 8], strides = [1, 1]} : vector<8x32xf32> to vector<8x8xf32>
    %62 = vector.shape_cast %58 : vector<8x8xf32> to vector<1x8x8xf32>
    %63 = vector.shape_cast %59 : vector<8x8xf32> to vector<1x8x8xf32>
    %64 = vector.shape_cast %60 : vector<8x8xf32> to vector<1x8x8xf32>
    %65 = vector.shape_cast %61 : vector<8x8xf32> to vector<1x8x8xf32>
    %66 = tpu.concatenate %62, %63, %64, %65 in 0 : vector<1x8x8xf32>, vector<1x8x8xf32>, vector<1x8x8xf32>, vector<1x8x8xf32> -> vector<4x8x8xf32>
    %67 = arith.truncf %66 : vector<4x8x8xf32> to vector<4x8x8xbf16>
    %68 = vector.extract_strided_slice %56 {offsets = [0, 32], sizes = [8, 32], strides = [1, 1]} : vector<8x96xf32> to vector<8x32xf32>
    %69 = vector.extract_strided_slice %68 {offsets = [0, 0], sizes = [8, 8], strides = [1, 1]} : vector<8x32xf32> to vector<8x8xf32>
    %70 = vector.extract_strided_slice %68 {offsets = [0, 8], sizes = [8, 8], strides = [1, 1]} : vector<8x32xf32> to vector<8x8xf32>
    %71 = vector.extract_strided_slice %68 {offsets = [0, 16], sizes = [8, 8], strides = [1, 1]} : vector<8x32xf32> to vector<8x8xf32>
    %72 = vector.extract_strided_slice %68 {offsets = [0, 24], sizes = [8, 8], strides = [1, 1]} : vector<8x32xf32> to vector<8x8xf32>
    %73 = vector.shape_cast %69 : vector<8x8xf32> to vector<1x8x8xf32>
    %74 = vector.shape_cast %70 : vector<8x8xf32> to vector<1x8x8xf32>
    %75 = vector.shape_cast %71 : vector<8x8xf32> to vector<1x8x8xf32>
    %76 = vector.shape_cast %72 : vector<8x8xf32> to vector<1x8x8xf32>
    %77 = tpu.concatenate %73, %74, %75, %76 in 0 : vector<1x8x8xf32>, vector<1x8x8xf32>, vector<1x8x8xf32>, vector<1x8x8xf32> -> vector<4x8x8xf32>
    %78 = arith.truncf %77 : vector<4x8x8xf32> to vector<4x8x8xbf16>
    %79 = vector.extract_strided_slice %56 {offsets = [0, 64], sizes = [8, 32], strides = [1, 1]} : vector<8x96xf32> to vector<8x32xf32>
    %80 = vector.extract_strided_slice %79 {offsets = [0, 0], sizes = [8, 8], strides = [1, 1]} : vector<8x32xf32> to vector<8x8xf32>
    %81 = vector.extract_strided_slice %79 {offsets = [0, 8], sizes = [8, 8], strides = [1, 1]} : vector<8x32xf32> to vector<8x8xf32>
    %82 = vector.extract_strided_slice %79 {offsets = [0, 16], sizes = [8, 8], strides = [1, 1]} : vector<8x32xf32> to vector<8x8xf32>
    %83 = vector.extract_strided_slice %79 {offsets = [0, 24], sizes = [8, 8], strides = [1, 1]} : vector<8x32xf32> to vector<8x8xf32>
    %84 = vector.shape_cast %80 : vector<8x8xf32> to vector<1x8x8xf32>
    %85 = vector.shape_cast %81 : vector<8x8xf32> to vector<1x8x8xf32>
    %86 = vector.shape_cast %82 : vector<8x8xf32> to vector<1x8x8xf32>
    %87 = vector.shape_cast %83 : vector<8x8xf32> to vector<1x8x8xf32>
    %88 = tpu.concatenate %84, %85, %86, %87 in 0 : vector<1x8x8xf32>, vector<1x8x8xf32>, vector<1x8x8xf32>, vector<1x8x8xf32> -> vector<4x8x8xf32>
    %89 = arith.truncf %88 : vector<4x8x8xf32> to vector<4x8x8xbf16>
    "tpu.trace_start"() <{level = 10 : i32, message = "gqd,gkd->gqk"}> : () -> ()
    %cst_17 = arith.constant dense<0.000000e+00> : vector<4x8x8xf32>
    %90 = tpu.matmul %67, %78, %cst_17 {dimension_numbers = #tpu.dot_dimension_numbers<[2], [2], [1], [1], [0, 0, 0, 1, 1, 1], [0], [0]>} : vector<4x8x8xbf16>, vector<4x8x8xbf16>, vector<4x8x8xf32> -> vector<4x8x8xf32>
    "tpu.trace_stop"() : () -> ()
    %91 = vector.broadcast %18 : vector<1x1x8xf32> to vector<4x8x8xf32>
    %92 = arith.addf %90, %91 : vector<4x8x8xf32>
    %cst_18 = arith.constant dense<0xFF800000> : vector<4x8xf32>
    %93 = vector.multi_reduction <maximumf>, %92, %cst_18 [2] : vector<4x8x8xf32> to vector<4x8xf32>
    %94 = vector.shape_cast %93 : vector<4x8xf32> to vector<4x8x1xf32>
    %95 = vector.broadcast %94 : vector<4x8x1xf32> to vector<4x8x8xf32>
    %96 = arith.subf %92, %95 : vector<4x8x8xf32>
    %97 = math.exp %96 : vector<4x8x8xf32>
    %cst_19 = arith.constant dense<0.000000e+00> : vector<4x8xf32>
    %98 = vector.multi_reduction <add>, %97, %cst_19 [2] : vector<4x8x8xf32> to vector<4x8xf32>
    %99 = vector.shape_cast %98 : vector<4x8xf32> to vector<4x8x1xf32>
    %100 = tpu.reciprocal %99 {approx = true} : vector<4x8x1xf32> -> vector<4x8x1xf32>
    %101 = vector.broadcast %100 : vector<4x8x1xf32> to vector<4x8x8xf32>
    %102 = arith.mulf %97, %101 : vector<4x8x8xf32>
    %103 = arith.truncf %102 : vector<4x8x8xf32> to vector<4x8x8xbf16>
    "tpu.trace_start"() <{level = 10 : i32, message = "gqk,gkd->gqd"}> : () -> ()
    %cst_20 = arith.constant dense<0.000000e+00> : vector<4x8x8xf32>
    %104 = tpu.matmul %103, %89, %cst_20 {dimension_numbers = #tpu.dot_dimension_numbers<[2], [1], [1], [2], [0, 0, 0, 1, 1, 2], [0], [0]>} : vector<4x8x8xbf16>, vector<4x8x8xbf16>, vector<4x8x8xf32> -> vector<4x8x8xf32>
    "tpu.trace_stop"() : () -> ()
    %105 = vector.shape_cast %104 : vector<4x8x8xf32> to vector<4x1x8x8xf32>
    %106 = vector.extract_strided_slice %105 {offsets = [0, 0, 0, 0], sizes = [1, 1, 8, 8], strides = [1, 1, 1, 1]} : vector<4x1x8x8xf32> to vector<1x1x8x8xf32>
    %107 = vector.shape_cast %106 : vector<1x1x8x8xf32> to vector<1x8x8xf32>
    %108 = vector.extract_strided_slice %105 {offsets = [1, 0, 0, 0], sizes = [1, 1, 8, 8], strides = [1, 1, 1, 1]} : vector<4x1x8x8xf32> to vector<1x1x8x8xf32>
    %109 = vector.shape_cast %108 : vector<1x1x8x8xf32> to vector<1x8x8xf32>
    %110 = vector.extract_strided_slice %105 {offsets = [2, 0, 0, 0], sizes = [1, 1, 8, 8], strides = [1, 1, 1, 1]} : vector<4x1x8x8xf32> to vector<1x1x8x8xf32>
    %111 = vector.shape_cast %110 : vector<1x1x8x8xf32> to vector<1x8x8xf32>
    %112 = vector.extract_strided_slice %105 {offsets = [3, 0, 0, 0], sizes = [1, 1, 8, 8], strides = [1, 1, 1, 1]} : vector<4x1x8x8xf32> to vector<1x1x8x8xf32>
    %113 = vector.shape_cast %112 : vector<1x1x8x8xf32> to vector<1x8x8xf32>
    %114 = tpu.concatenate %107, %109, %111, %113 in 2 : vector<1x8x8xf32>, vector<1x8x8xf32>, vector<1x8x8xf32>, vector<1x8x8xf32> -> vector<1x8x32xf32>
    %115 = vector.shape_cast %114 : vector<1x8x32xf32> to vector<8x32xf32>
    %116 = arith.truncf %115 : vector<8x32xf32> to vector<8x32xbf16>
    %c0_21 = arith.constant 0 : index
    %c0_22 = arith.constant 0 : index
    %c0_23 = arith.constant 0 : index
    %117 = vector.load %arg4[%c0_21, %c0_22, %c0_23] : memref<2x32x32xbf16, #tpu.memory_space<vmem>>, vector<1x32x32xbf16>
    %118 = vector.shape_cast %117 : vector<1x32x32xbf16> to vector<32x32xbf16>
    %cst_24 = arith.constant dense<0.000000e+00> : vector<8x32xf32>
    %119 = tpu.matmul %116, %118, %cst_24 {dimension_numbers = #tpu.dot_dimension_numbers<[1], [0], [0], [1], [0, 0, 1, 1], [], []>} : vector<8x32xbf16>, vector<32x32xbf16>, vector<8x32xf32> -> vector<8x32xf32>
    %120 = vector.broadcast %22 : vector<1x32xf32> to vector<8x32xf32>
    %121 = arith.addf %119, %120 : vector<8x32xf32>
    %122 = vector.broadcast %23 : vector<1x32xf32> to vector<8x32xf32>
    %123 = arith.mulf %122, %121 : vector<8x32xf32>
    %124 = arith.addf %12, %123 : vector<8x32xf32>
    %cst_25 = arith.constant dense<0.000000e+00> : vector<8xf32>
    %125 = vector.multi_reduction <add>, %124, %cst_25 [1] : vector<8x32xf32> to vector<8xf32>
    %126 = vector.shape_cast %125 : vector<8xf32> to vector<8x1xf32>
    %cst_26 = arith.constant 3.200000e+01 : f32
    %127 = vector.broadcast %cst_26 : f32 to vector<8x1xf32>
    %128 = arith.divf %126, %127 : vector<8x1xf32>
    %129 = vector.broadcast %128 : vector<8x1xf32> to vector<8x32xf32>
    %130 = arith.subf %124, %129 : vector<8x32xf32>
    %131 = arith.mulf %130, %130 : vector<8x32xf32>
    %cst_27 = arith.constant dense<0.000000e+00> : vector<8xf32>
    %132 = vector.multi_reduction <add>, %131, %cst_27 [1] : vector<8x32xf32> to vector<8xf32>
    %133 = vector.shape_cast %132 : vector<8xf32> to vector<8x1xf32>
    %cst_28 = arith.constant 3.200000e+01 : f32
    %134 = vector.broadcast %cst_28 : f32 to vector<8x1xf32>
    %135 = arith.divf %133, %134 : vector<8x1xf32>
    %136 = vector.broadcast %128 : vector<8x1xf32> to vector<8x32xf32>
    %137 = arith.subf %124, %136 : vector<8x32xf32>
    %cst_29 = arith.constant 9.99999997E-7 : f32
    %138 = vector.broadcast %cst_29 : f32 to vector<8x1xf32>
    %139 = arith.addf %135, %138 : vector<8x1xf32>
    %140 = math.rsqrt %139 : vector<8x1xf32>
    %141 = vector.broadcast %140 : vector<8x1xf32> to vector<8x32xf32>
    %142 = arith.mulf %137, %141 : vector<8x32xf32>
    %143 = vector.broadcast %24 : vector<1x32xf32> to vector<8x32xf32>
    %144 = arith.mulf %142, %143 : vector<8x32xf32>
    %145 = vector.broadcast %25 : vector<1x32xf32> to vector<8x32xf32>
    %146 = arith.addf %144, %145 : vector<8x32xf32>
    %147 = arith.truncf %146 : vector<8x32xf32> to vector<8x32xbf16>
    %c0_30 = arith.constant 0 : index
    %c0_31 = arith.constant 0 : index
    %c0_32 = arith.constant 0 : index
    %148 = vector.load %arg5[%c0_30, %c0_31, %c0_32] : memref<2x32x128xbf16, #tpu.memory_space<vmem>>, vector<1x32x128xbf16>
    %149 = vector.shape_cast %148 : vector<1x32x128xbf16> to vector<32x128xbf16>
    %cst_33 = arith.constant dense<0.000000e+00> : vector<8x128xf32>
    %150 = tpu.matmul %147, %149, %cst_33 {dimension_numbers = #tpu.dot_dimension_numbers<[1], [0], [0], [1], [0, 0, 1, 1], [], []>} : vector<8x32xbf16>, vector<32x128xbf16>, vector<8x128xf32> -> vector<8x128xf32>
    %151 = vector.broadcast %26 : vector<1x128xf32> to vector<8x128xf32>
    %152 = arith.addf %150, %151 : vector<8x128xf32>
    %cst_34 = arith.constant 5.000000e-01 : f32
    %153 = vector.broadcast %cst_34 : f32 to vector<8x128xf32>
    %154 = arith.mulf %153, %152 : vector<8x128xf32>
    %cst_35 = arith.constant 4.471500e-02 : f32
    %155 = vector.broadcast %cst_35 : f32 to vector<8x128xf32>
    %156 = arith.mulf %155, %152 : vector<8x128xf32>
    %157 = arith.mulf %156, %152 : vector<8x128xf32>
    %158 = arith.mulf %157, %152 : vector<8x128xf32>
    %159 = arith.addf %152, %158 : vector<8x128xf32>
    %cst_36 = arith.constant 0.797884583 : f32
    %160 = vector.broadcast %cst_36 : f32 to vector<8x128xf32>
    %161 = arith.mulf %160, %159 : vector<8x128xf32>
    %162 = math.tanh %161 : vector<8x128xf32>
    %cst_37 = arith.constant 1.000000e+00 : f32
    %163 = vector.broadcast %cst_37 : f32 to vector<8x128xf32>
    %164 = arith.addf %163, %162 : vector<8x128xf32>
    %165 = arith.mulf %154, %164 : vector<8x128xf32>
    %166 = arith.truncf %165 : vector<8x128xf32> to vector<8x128xbf16>
    %c0_38 = arith.constant 0 : index
    %c0_39 = arith.constant 0 : index
    %c0_40 = arith.constant 0 : index
    %167 = vector.load %arg6[%c0_38, %c0_39, %c0_40] : memref<2x128x32xbf16, #tpu.memory_space<vmem>>, vector<1x128x32xbf16>
    %168 = vector.shape_cast %167 : vector<1x128x32xbf16> to vector<128x32xbf16>
    %cst_41 = arith.constant dense<0.000000e+00> : vector<8x32xf32>
    %169 = tpu.matmul %166, %168, %cst_41 {dimension_numbers = #tpu.dot_dimension_numbers<[1], [0], [0], [1], [0, 0, 1, 1], [], []>} : vector<8x128xbf16>, vector<128x32xbf16>, vector<8x32xf32> -> vector<8x32xf32>
    %170 = vector.broadcast %27 : vector<1x32xf32> to vector<8x32xf32>
    %171 = arith.addf %169, %170 : vector<8x32xf32>
    %172 = vector.broadcast %28 : vector<1x32xf32> to vector<8x32xf32>
    %173 = arith.mulf %172, %171 : vector<8x32xf32>
    %174 = arith.addf %124, %173 : vector<8x32xf32>
    %175 = vector.extract_strided_slice %0 {offsets = [32, 0], sizes = [1, 32], strides = [1, 1]} : vector<48x128xf32> to vector<1x32xf32>
    %176 = vector.extract_strided_slice %0 {offsets = [33, 0], sizes = [1, 32], strides = [1, 1]} : vector<48x128xf32> to vector<1x32xf32>
    %177 = vector.extract_strided_slice %0 {offsets = [34, 0], sizes = [1, 96], strides = [1, 1]} : vector<48x128xf32> to vector<1x96xf32>
    %178 = vector.extract_strided_slice %0 {offsets = [35, 0], sizes = [1, 32], strides = [1, 1]} : vector<48x128xf32> to vector<1x32xf32>
    %179 = vector.extract_strided_slice %0 {offsets = [36, 0], sizes = [1, 32], strides = [1, 1]} : vector<48x128xf32> to vector<1x32xf32>
    %180 = vector.extract_strided_slice %0 {offsets = [37, 0], sizes = [1, 32], strides = [1, 1]} : vector<48x128xf32> to vector<1x32xf32>
    %181 = vector.extract_strided_slice %0 {offsets = [38, 0], sizes = [1, 32], strides = [1, 1]} : vector<48x128xf32> to vector<1x32xf32>
    %182 = vector.extract_strided_slice %0 {offsets = [39, 0], sizes = [1, 128], strides = [1, 1]} : vector<48x128xf32> to vector<1x128xf32>
    %183 = vector.extract_strided_slice %0 {offsets = [40, 0], sizes = [1, 32], strides = [1, 1]} : vector<48x128xf32> to vector<1x32xf32>
    %184 = vector.extract_strided_slice %0 {offsets = [41, 0], sizes = [1, 32], strides = [1, 1]} : vector<48x128xf32> to vector<1x32xf32>
    %cst_42 = arith.constant dense<0.000000e+00> : vector<8xf32>
    %185 = vector.multi_reduction <add>, %174, %cst_42 [1] : vector<8x32xf32> to vector<8xf32>
    %186 = vector.shape_cast %185 : vector<8xf32> to vector<8x1xf32>
    %cst_43 = arith.constant 3.200000e+01 : f32
    %187 = vector.broadcast %cst_43 : f32 to vector<8x1xf32>
    %188 = arith.divf %186, %187 : vector<8x1xf32>
    %189 = vector.broadcast %188 : vector<8x1xf32> to vector<8x32xf32>
    %190 = arith.subf %174, %189 : vector<8x32xf32>
    %191 = arith.mulf %190, %190 : vector<8x32xf32>
    %cst_44 = arith.constant dense<0.000000e+00> : vector<8xf32>
    %192 = vector.multi_reduction <add>, %191, %cst_44 [1] : vector<8x32xf32> to vector<8xf32>
    %193 = vector.shape_cast %192 : vector<8xf32> to vector<8x1xf32>
    %cst_45 = arith.constant 3.200000e+01 : f32
    %194 = vector.broadcast %cst_45 : f32 to vector<8x1xf32>
    %195 = arith.divf %193, %194 : vector<8x1xf32>
    %196 = vector.broadcast %188 : vector<8x1xf32> to vector<8x32xf32>
    %197 = arith.subf %174, %196 : vector<8x32xf32>
    %cst_46 = arith.constant 9.99999997E-7 : f32
    %198 = vector.broadcast %cst_46 : f32 to vector<8x1xf32>
    %199 = arith.addf %195, %198 : vector<8x1xf32>
    %200 = math.rsqrt %199 : vector<8x1xf32>
    %201 = vector.broadcast %200 : vector<8x1xf32> to vector<8x32xf32>
    %202 = arith.mulf %197, %201 : vector<8x32xf32>
    %203 = vector.broadcast %175 : vector<1x32xf32> to vector<8x32xf32>
    %204 = arith.mulf %202, %203 : vector<8x32xf32>
    %205 = vector.broadcast %176 : vector<1x32xf32> to vector<8x32xf32>
    %206 = arith.addf %204, %205 : vector<8x32xf32>
    %207 = arith.truncf %206 : vector<8x32xf32> to vector<8x32xbf16>
    %c1 = arith.constant 1 : index
    %c0_47 = arith.constant 0 : index
    %c0_48 = arith.constant 0 : index
    %208 = vector.load %arg3[%c1, %c0_47, %c0_48] : memref<2x32x96xbf16, #tpu.memory_space<vmem>>, vector<1x32x96xbf16>
    %209 = vector.shape_cast %208 : vector<1x32x96xbf16> to vector<32x96xbf16>
    %cst_49 = arith.constant dense<0.000000e+00> : vector<8x96xf32>
    %210 = tpu.matmul %207, %209, %cst_49 {dimension_numbers = #tpu.dot_dimension_numbers<[1], [0], [0], [1], [0, 0, 1, 1], [], []>} : vector<8x32xbf16>, vector<32x96xbf16>, vector<8x96xf32> -> vector<8x96xf32>
    %211 = vector.broadcast %177 : vector<1x96xf32> to vector<8x96xf32>
    %212 = arith.addf %210, %211 : vector<8x96xf32>
    %213 = vector.extract_strided_slice %212 {offsets = [0, 0], sizes = [8, 32], strides = [1, 1]} : vector<8x96xf32> to vector<8x32xf32>
    %214 = vector.extract_strided_slice %213 {offsets = [0, 0], sizes = [8, 8], strides = [1, 1]} : vector<8x32xf32> to vector<8x8xf32>
    %215 = vector.extract_strided_slice %213 {offsets = [0, 8], sizes = [8, 8], strides = [1, 1]} : vector<8x32xf32> to vector<8x8xf32>
    %216 = vector.extract_strided_slice %213 {offsets = [0, 16], sizes = [8, 8], strides = [1, 1]} : vector<8x32xf32> to vector<8x8xf32>
    %217 = vector.extract_strided_slice %213 {offsets = [0, 24], sizes = [8, 8], strides = [1, 1]} : vector<8x32xf32> to vector<8x8xf32>
    %218 = vector.shape_cast %214 : vector<8x8xf32> to vector<1x8x8xf32>
    %219 = vector.shape_cast %215 : vector<8x8xf32> to vector<1x8x8xf32>
    %220 = vector.shape_cast %216 : vector<8x8xf32> to vector<1x8x8xf32>
    %221 = vector.shape_cast %217 : vector<8x8xf32> to vector<1x8x8xf32>
    %222 = tpu.concatenate %218, %219, %220, %221 in 0 : vector<1x8x8xf32>, vector<1x8x8xf32>, vector<1x8x8xf32>, vector<1x8x8xf32> -> vector<4x8x8xf32>
    %223 = arith.truncf %222 : vector<4x8x8xf32> to vector<4x8x8xbf16>
    %224 = vector.extract_strided_slice %212 {offsets = [0, 32], sizes = [8, 32], strides = [1, 1]} : vector<8x96xf32> to vector<8x32xf32>
    %225 = vector.extract_strided_slice %224 {offsets = [0, 0], sizes = [8, 8], strides = [1, 1]} : vector<8x32xf32> to vector<8x8xf32>
    %226 = vector.extract_strided_slice %224 {offsets = [0, 8], sizes = [8, 8], strides = [1, 1]} : vector<8x32xf32> to vector<8x8xf32>
    %227 = vector.extract_strided_slice %224 {offsets = [0, 16], sizes = [8, 8], strides = [1, 1]} : vector<8x32xf32> to vector<8x8xf32>
    %228 = vector.extract_strided_slice %224 {offsets = [0, 24], sizes = [8, 8], strides = [1, 1]} : vector<8x32xf32> to vector<8x8xf32>
    %229 = vector.shape_cast %225 : vector<8x8xf32> to vector<1x8x8xf32>
    %230 = vector.shape_cast %226 : vector<8x8xf32> to vector<1x8x8xf32>
    %231 = vector.shape_cast %227 : vector<8x8xf32> to vector<1x8x8xf32>
    %232 = vector.shape_cast %228 : vector<8x8xf32> to vector<1x8x8xf32>
    %233 = tpu.concatenate %229, %230, %231, %232 in 0 : vector<1x8x8xf32>, vector<1x8x8xf32>, vector<1x8x8xf32>, vector<1x8x8xf32> -> vector<4x8x8xf32>
    %234 = arith.truncf %233 : vector<4x8x8xf32> to vector<4x8x8xbf16>
    %235 = vector.extract_strided_slice %212 {offsets = [0, 64], sizes = [8, 32], strides = [1, 1]} : vector<8x96xf32> to vector<8x32xf32>
    %236 = vector.extract_strided_slice %235 {offsets = [0, 0], sizes = [8, 8], strides = [1, 1]} : vector<8x32xf32> to vector<8x8xf32>
    %237 = vector.extract_strided_slice %235 {offsets = [0, 8], sizes = [8, 8], strides = [1, 1]} : vector<8x32xf32> to vector<8x8xf32>
    %238 = vector.extract_strided_slice %235 {offsets = [0, 16], sizes = [8, 8], strides = [1, 1]} : vector<8x32xf32> to vector<8x8xf32>
    %239 = vector.extract_strided_slice %235 {offsets = [0, 24], sizes = [8, 8], strides = [1, 1]} : vector<8x32xf32> to vector<8x8xf32>
    %240 = vector.shape_cast %236 : vector<8x8xf32> to vector<1x8x8xf32>
    %241 = vector.shape_cast %237 : vector<8x8xf32> to vector<1x8x8xf32>
    %242 = vector.shape_cast %238 : vector<8x8xf32> to vector<1x8x8xf32>
    %243 = vector.shape_cast %239 : vector<8x8xf32> to vector<1x8x8xf32>
    %244 = tpu.concatenate %240, %241, %242, %243 in 0 : vector<1x8x8xf32>, vector<1x8x8xf32>, vector<1x8x8xf32>, vector<1x8x8xf32> -> vector<4x8x8xf32>
    %245 = arith.truncf %244 : vector<4x8x8xf32> to vector<4x8x8xbf16>
    "tpu.trace_start"() <{level = 10 : i32, message = "gqd,gkd->gqk"}> : () -> ()
    %cst_50 = arith.constant dense<0.000000e+00> : vector<4x8x8xf32>
    %246 = tpu.matmul %223, %234, %cst_50 {dimension_numbers = #tpu.dot_dimension_numbers<[2], [2], [1], [1], [0, 0, 0, 1, 1, 1], [0], [0]>} : vector<4x8x8xbf16>, vector<4x8x8xbf16>, vector<4x8x8xf32> -> vector<4x8x8xf32>
    "tpu.trace_stop"() : () -> ()
    %247 = vector.broadcast %18 : vector<1x1x8xf32> to vector<4x8x8xf32>
    %248 = arith.addf %246, %247 : vector<4x8x8xf32>
    %cst_51 = arith.constant dense<0xFF800000> : vector<4x8xf32>
    %249 = vector.multi_reduction <maximumf>, %248, %cst_51 [2] : vector<4x8x8xf32> to vector<4x8xf32>
    %250 = vector.shape_cast %249 : vector<4x8xf32> to vector<4x8x1xf32>
    %251 = vector.broadcast %250 : vector<4x8x1xf32> to vector<4x8x8xf32>
    %252 = arith.subf %248, %251 : vector<4x8x8xf32>
    %253 = math.exp %252 : vector<4x8x8xf32>
    %cst_52 = arith.constant dense<0.000000e+00> : vector<4x8xf32>
    %254 = vector.multi_reduction <add>, %253, %cst_52 [2] : vector<4x8x8xf32> to vector<4x8xf32>
    %255 = vector.shape_cast %254 : vector<4x8xf32> to vector<4x8x1xf32>
    %256 = tpu.reciprocal %255 {approx = true} : vector<4x8x1xf32> -> vector<4x8x1xf32>
    %257 = vector.broadcast %256 : vector<4x8x1xf32> to vector<4x8x8xf32>
    %258 = arith.mulf %253, %257 : vector<4x8x8xf32>
    %259 = arith.truncf %258 : vector<4x8x8xf32> to vector<4x8x8xbf16>
    "tpu.trace_start"() <{level = 10 : i32, message = "gqk,gkd->gqd"}> : () -> ()
    %cst_53 = arith.constant dense<0.000000e+00> : vector<4x8x8xf32>
    %260 = tpu.matmul %259, %245, %cst_53 {dimension_numbers = #tpu.dot_dimension_numbers<[2], [1], [1], [2], [0, 0, 0, 1, 1, 2], [0], [0]>} : vector<4x8x8xbf16>, vector<4x8x8xbf16>, vector<4x8x8xf32> -> vector<4x8x8xf32>
    "tpu.trace_stop"() : () -> ()
    %261 = vector.shape_cast %260 : vector<4x8x8xf32> to vector<4x1x8x8xf32>
    %262 = vector.extract_strided_slice %261 {offsets = [0, 0, 0, 0], sizes = [1, 1, 8, 8], strides = [1, 1, 1, 1]} : vector<4x1x8x8xf32> to vector<1x1x8x8xf32>
    %263 = vector.shape_cast %262 : vector<1x1x8x8xf32> to vector<1x8x8xf32>
    %264 = vector.extract_strided_slice %261 {offsets = [1, 0, 0, 0], sizes = [1, 1, 8, 8], strides = [1, 1, 1, 1]} : vector<4x1x8x8xf32> to vector<1x1x8x8xf32>
    %265 = vector.shape_cast %264 : vector<1x1x8x8xf32> to vector<1x8x8xf32>
    %266 = vector.extract_strided_slice %261 {offsets = [2, 0, 0, 0], sizes = [1, 1, 8, 8], strides = [1, 1, 1, 1]} : vector<4x1x8x8xf32> to vector<1x1x8x8xf32>
    %267 = vector.shape_cast %266 : vector<1x1x8x8xf32> to vector<1x8x8xf32>
    %268 = vector.extract_strided_slice %261 {offsets = [3, 0, 0, 0], sizes = [1, 1, 8, 8], strides = [1, 1, 1, 1]} : vector<4x1x8x8xf32> to vector<1x1x8x8xf32>
    %269 = vector.shape_cast %268 : vector<1x1x8x8xf32> to vector<1x8x8xf32>
    %270 = tpu.concatenate %263, %265, %267, %269 in 2 : vector<1x8x8xf32>, vector<1x8x8xf32>, vector<1x8x8xf32>, vector<1x8x8xf32> -> vector<1x8x32xf32>
    %271 = vector.shape_cast %270 : vector<1x8x32xf32> to vector<8x32xf32>
    %272 = arith.truncf %271 : vector<8x32xf32> to vector<8x32xbf16>
    %c1_54 = arith.constant 1 : index
    %c0_55 = arith.constant 0 : index
    %c0_56 = arith.constant 0 : index
    %273 = vector.load %arg4[%c1_54, %c0_55, %c0_56] : memref<2x32x32xbf16, #tpu.memory_space<vmem>>, vector<1x32x32xbf16>
    %274 = vector.shape_cast %273 : vector<1x32x32xbf16> to vector<32x32xbf16>
    %cst_57 = arith.constant dense<0.000000e+00> : vector<8x32xf32>
    %275 = tpu.matmul %272, %274, %cst_57 {dimension_numbers = #tpu.dot_dimension_numbers<[1], [0], [0], [1], [0, 0, 1, 1], [], []>} : vector<8x32xbf16>, vector<32x32xbf16>, vector<8x32xf32> -> vector<8x32xf32>
    %276 = vector.broadcast %178 : vector<1x32xf32> to vector<8x32xf32>
    %277 = arith.addf %275, %276 : vector<8x32xf32>
    %278 = vector.broadcast %179 : vector<1x32xf32> to vector<8x32xf32>
    %279 = arith.mulf %278, %277 : vector<8x32xf32>
    %280 = arith.addf %174, %279 : vector<8x32xf32>
    %cst_58 = arith.constant dense<0.000000e+00> : vector<8xf32>
    %281 = vector.multi_reduction <add>, %280, %cst_58 [1] : vector<8x32xf32> to vector<8xf32>
    %282 = vector.shape_cast %281 : vector<8xf32> to vector<8x1xf32>
    %cst_59 = arith.constant 3.200000e+01 : f32
    %283 = vector.broadcast %cst_59 : f32 to vector<8x1xf32>
    %284 = arith.divf %282, %283 : vector<8x1xf32>
    %285 = vector.broadcast %284 : vector<8x1xf32> to vector<8x32xf32>
    %286 = arith.subf %280, %285 : vector<8x32xf32>
    %287 = arith.mulf %286, %286 : vector<8x32xf32>
    %cst_60 = arith.constant dense<0.000000e+00> : vector<8xf32>
    %288 = vector.multi_reduction <add>, %287, %cst_60 [1] : vector<8x32xf32> to vector<8xf32>
    %289 = vector.shape_cast %288 : vector<8xf32> to vector<8x1xf32>
    %cst_61 = arith.constant 3.200000e+01 : f32
    %290 = vector.broadcast %cst_61 : f32 to vector<8x1xf32>
    %291 = arith.divf %289, %290 : vector<8x1xf32>
    %292 = vector.broadcast %284 : vector<8x1xf32> to vector<8x32xf32>
    %293 = arith.subf %280, %292 : vector<8x32xf32>
    %cst_62 = arith.constant 9.99999997E-7 : f32
    %294 = vector.broadcast %cst_62 : f32 to vector<8x1xf32>
    %295 = arith.addf %291, %294 : vector<8x1xf32>
    %296 = math.rsqrt %295 : vector<8x1xf32>
    %297 = vector.broadcast %296 : vector<8x1xf32> to vector<8x32xf32>
    %298 = arith.mulf %293, %297 : vector<8x32xf32>
    %299 = vector.broadcast %180 : vector<1x32xf32> to vector<8x32xf32>
    %300 = arith.mulf %298, %299 : vector<8x32xf32>
    %301 = vector.broadcast %181 : vector<1x32xf32> to vector<8x32xf32>
    %302 = arith.addf %300, %301 : vector<8x32xf32>
    %303 = arith.truncf %302 : vector<8x32xf32> to vector<8x32xbf16>
    %c1_63 = arith.constant 1 : index
    %c0_64 = arith.constant 0 : index
    %c0_65 = arith.constant 0 : index
    %304 = vector.load %arg5[%c1_63, %c0_64, %c0_65] : memref<2x32x128xbf16, #tpu.memory_space<vmem>>, vector<1x32x128xbf16>
    %305 = vector.shape_cast %304 : vector<1x32x128xbf16> to vector<32x128xbf16>
    %cst_66 = arith.constant dense<0.000000e+00> : vector<8x128xf32>
    %306 = tpu.matmul %303, %305, %cst_66 {dimension_numbers = #tpu.dot_dimension_numbers<[1], [0], [0], [1], [0, 0, 1, 1], [], []>} : vector<8x32xbf16>, vector<32x128xbf16>, vector<8x128xf32> -> vector<8x128xf32>
    %307 = vector.broadcast %182 : vector<1x128xf32> to vector<8x128xf32>
    %308 = arith.addf %306, %307 : vector<8x128xf32>
    %cst_67 = arith.constant 5.000000e-01 : f32
    %309 = vector.broadcast %cst_67 : f32 to vector<8x128xf32>
    %310 = arith.mulf %309, %308 : vector<8x128xf32>
    %cst_68 = arith.constant 4.471500e-02 : f32
    %311 = vector.broadcast %cst_68 : f32 to vector<8x128xf32>
    %312 = arith.mulf %311, %308 : vector<8x128xf32>
    %313 = arith.mulf %312, %308 : vector<8x128xf32>
    %314 = arith.mulf %313, %308 : vector<8x128xf32>
    %315 = arith.addf %308, %314 : vector<8x128xf32>
    %cst_69 = arith.constant 0.797884583 : f32
    %316 = vector.broadcast %cst_69 : f32 to vector<8x128xf32>
    %317 = arith.mulf %316, %315 : vector<8x128xf32>
    %318 = math.tanh %317 : vector<8x128xf32>
    %cst_70 = arith.constant 1.000000e+00 : f32
    %319 = vector.broadcast %cst_70 : f32 to vector<8x128xf32>
    %320 = arith.addf %319, %318 : vector<8x128xf32>
    %321 = arith.mulf %310, %320 : vector<8x128xf32>
    %322 = arith.truncf %321 : vector<8x128xf32> to vector<8x128xbf16>
    %c1_71 = arith.constant 1 : index
    %c0_72 = arith.constant 0 : index
    %c0_73 = arith.constant 0 : index
    %323 = vector.load %arg6[%c1_71, %c0_72, %c0_73] : memref<2x128x32xbf16, #tpu.memory_space<vmem>>, vector<1x128x32xbf16>
    %324 = vector.shape_cast %323 : vector<1x128x32xbf16> to vector<128x32xbf16>
    %cst_74 = arith.constant dense<0.000000e+00> : vector<8x32xf32>
    %325 = tpu.matmul %322, %324, %cst_74 {dimension_numbers = #tpu.dot_dimension_numbers<[1], [0], [0], [1], [0, 0, 1, 1], [], []>} : vector<8x128xbf16>, vector<128x32xbf16>, vector<8x32xf32> -> vector<8x32xf32>
    %326 = vector.broadcast %183 : vector<1x32xf32> to vector<8x32xf32>
    %327 = arith.addf %325, %326 : vector<8x32xf32>
    %328 = vector.broadcast %184 : vector<1x32xf32> to vector<8x32xf32>
    %329 = arith.mulf %328, %327 : vector<8x32xf32>
    %330 = arith.addf %280, %329 : vector<8x32xf32>
    %331 = vector.shape_cast %330 : vector<8x32xf32> to vector<1x8x32xf32>
    %332 = vector.extract_strided_slice %331 {offsets = [0, 0, 0], sizes = [1, 1, 32], strides = [1, 1, 1]} : vector<1x8x32xf32> to vector<1x1x32xf32>
    %333 = vector.shape_cast %332 : vector<1x1x32xf32> to vector<1x32xf32>
    %cst_75 = arith.constant dense<0.000000e+00> : vector<1xf32>
    %334 = vector.multi_reduction <add>, %333, %cst_75 [1] : vector<1x32xf32> to vector<1xf32>
    %335 = vector.shape_cast %334 : vector<1xf32> to vector<1x1xf32>
    %cst_76 = arith.constant 3.200000e+01 : f32
    %336 = vector.broadcast %cst_76 : f32 to vector<1x1xf32>
    %337 = arith.divf %335, %336 : vector<1x1xf32>
    %338 = vector.broadcast %337 : vector<1x1xf32> to vector<1x32xf32>
    %339 = arith.subf %333, %338 : vector<1x32xf32>
    %340 = arith.mulf %339, %339 : vector<1x32xf32>
    %cst_77 = arith.constant dense<0.000000e+00> : vector<1xf32>
    %341 = vector.multi_reduction <add>, %340, %cst_77 [1] : vector<1x32xf32> to vector<1xf32>
    %342 = vector.shape_cast %341 : vector<1xf32> to vector<1x1xf32>
    %cst_78 = arith.constant 3.200000e+01 : f32
    %343 = vector.broadcast %cst_78 : f32 to vector<1x1xf32>
    %344 = arith.divf %342, %343 : vector<1x1xf32>
    %345 = vector.broadcast %337 : vector<1x1xf32> to vector<1x32xf32>
    %346 = arith.subf %333, %345 : vector<1x32xf32>
    %cst_79 = arith.constant 9.99999997E-7 : f32
    %347 = vector.broadcast %cst_79 : f32 to vector<1x1xf32>
    %348 = arith.addf %344, %347 : vector<1x1xf32>
    %349 = math.rsqrt %348 : vector<1x1xf32>
    %350 = vector.broadcast %349 : vector<1x1xf32> to vector<1x32xf32>
    %351 = arith.mulf %346, %350 : vector<1x32xf32>
    %352 = arith.mulf %351, %2 : vector<1x32xf32>
    %353 = arith.addf %352, %3 : vector<1x32xf32>
    %354 = arith.truncf %353 : vector<1x32xf32> to vector<1x32xbf16>
    %c0_80 = arith.constant 0 : index
    %c0_81 = arith.constant 0 : index
    %355 = vector.load %arg7[%c0_80, %c0_81] : memref<32x128xbf16, #tpu.memory_space<vmem>>, vector<32x128xbf16>
    %cst_82 = arith.constant dense<0.000000e+00> : vector<1x128xf32>
    %356 = tpu.matmul %354, %355, %cst_82 {dimension_numbers = #tpu.dot_dimension_numbers<[1], [0], [0], [1], [0, 0, 1, 1], [], []>} : vector<1x32xbf16>, vector<32x128xbf16>, vector<1x128xf32> -> vector<1x128xf32>
    %357 = arith.addf %356, %4 : vector<1x128xf32>
    %358 = vector.shape_cast %357 : vector<1x128xf32> to vector<1x1x128xf32>
    %c0_83 = arith.constant 0 : index
    %c0_84 = arith.constant 0 : index
    %c0_85 = arith.constant 0 : index
    %359 = vector.load %arg9[%c0_83, %c0_84, %c0_85] : memref<1x1x128xf32, #tpu.memory_space<vmem>>, vector<1x1x128xf32>
    tpu.vector_store %arg9[%c0_83, %c0_84, %c0_85], %358 {strides = array<i32>} : memref<1x1x128xf32, #tpu.memory_space<vmem>>, vector<1x1x128xf32>,
    return
  }
  func.func @transform_0(%arg0: i32) -> (i32, i32, i32) {
    %c0_i32 = arith.constant 0 : i32
    %c0_i32_0 = arith.constant 0 : i32
    %c0_i32_1 = arith.constant 0 : i32
    return %arg0, %c0_i32, %c0_i32_0 : i32, i32, i32
  }
  func.func @transform_1(%arg0: i32) -> (i32, i32) {
    %c0_i32 = arith.constant 0 : i32
    %c0_i32_0 = arith.constant 0 : i32
    %c0_i32_1 = arith.constant 0 : i32
    return %c0_i32, %c0_i32_0 : i32, i32
  }
  func.func @transform_2(%arg0: i32) -> (i32, i32, i32) {
    %c0_i32 = arith.constant 0 : i32
    %c0_i32_0 = arith.constant 0 : i32
    %c0_i32_1 = arith.constant 0 : i32
    %c0_i32_2 = arith.constant 0 : i32
    return %c0_i32, %c0_i32_0, %c0_i32_1 : i32, i32, i32
  }
  func.func @transform_3(%arg0: i32) -> (i32, i32, i32) {
    %c0_i32 = arith.constant 0 : i32
    %c0_i32_0 = arith.constant 0 : i32
    %c0_i32_1 = arith.constant 0 : i32
    %c0_i32_2 = arith.constant 0 : i32
    return %c0_i32, %c0_i32_0, %c0_i32_1 : i32, i32, i32
  }
  func.func @transform_4(%arg0: i32) -> (i32, i32, i32) {
    %c0_i32 = arith.constant 0 : i32
    %c0_i32_0 = arith.constant 0 : i32
    %c0_i32_1 = arith.constant 0 : i32
    %c0_i32_2 = arith.constant 0 : i32
    return %c0_i32, %c0_i32_0, %c0_i32_1 : i32, i32, i32
  }
  func.func @transform_5(%arg0: i32) -> (i32, i32, i32) {
    %c0_i32 = arith.constant 0 : i32
    %c0_i32_0 = arith.constant 0 : i32
    %c0_i32_1 = arith.constant 0 : i32
    %c0_i32_2 = arith.constant 0 : i32
    return %c0_i32, %c0_i32_0, %c0_i32_1 : i32, i32, i32
  }
  func.func @transform_6(%arg0: i32) -> (i32, i32) {
    %c0_i32 = arith.constant 0 : i32
    %c0_i32_0 = arith.constant 0 : i32
    %c0_i32_1 = arith.constant 0 : i32
    return %c0_i32, %c0_i32_0 : i32, i32
  }
  func.func @transform_7(%arg0: i32) -> (i32, i32) {
    %c0_i32 = arith.constant 0 : i32
    %c0_i32_0 = arith.constant 0 : i32
    %c0_i32_1 = arith.constant 0 : i32
    return %c0_i32, %c0_i32_0 : i32, i32
  }
  func.func @transform_8(%arg0: i32) -> (i32, i32, i32) {
    %c0_i32 = arith.constant 0 : i32
    %c0_i32_0 = arith.constant 0 : i32
    %c0_i32_1 = arith.constant 0 : i32
    return %arg0, %c0_i32, %c0_i32_0 : i32, i32, i32
  }
}

</mosaic_0001>

<llo_original>
// kernel: classifier_forward.1
$region0: #{classifier_forward.1}
  #allocation0 [shape = 'u32[]', space=smem, size = 0x4, offset = 0x4, fixed_abs, tag = 'smem constant byte address 0x4 - core index']
  #allocation1 [shape = 'u32[72,128]{1,0:T(1,128)}', space=vmem, size = 0x9000, scoped, tag = 'internal scratch']
  %s0 = inlined_call_operand.vmem [shape: bf16[2,8,640], index: 0, kind: input, shape index: {}]
  %s1 = inlined_call_operand.vmem [shape: bf16[640,32], index: 1, kind: input, shape index: {}]
  %s2 = inlined_call_operand.vmem [shape: bf16[2,32,96], index: 2, kind: input, shape index: {}]
  %s3 = inlined_call_operand.vmem [shape: bf16[2,32,32], index: 3, kind: input, shape index: {}]
  %s4 = inlined_call_operand.vmem [shape: bf16[2,32,128], index: 4, kind: input, shape index: {}]
  %s5 = inlined_call_operand.vmem [shape: bf16[2,128,32], index: 5, kind: input, shape index: {}]
  %s6 = inlined_call_operand.vmem [shape: bf16[32,128], index: 6, kind: input, shape index: {}]
  %s7 = inlined_call_operand.vmem [shape: f32[48,128], index: 7, kind: input, shape index: {}]
  %s8 = inlined_call_operand.hbm [shape: f32[2,1,128], index: 8, kind: output, shape index: {}]
  %s9 = sld [smem:[#allocation0]]
  $region65: #{classifier_forward.1} parent=0
    _
  %s11 = ssub.s32 1, %s9
  %s12 = scalar_select 0, %s11, %s9
  $region1: #{classifier_forward.1} parent=0
    #allocation2 [shape = 'u8[1024]{0}', space=vmem, size = 0x400, scoped, tag = 'output window, operand 0']
    #allocation3 [shape = 's32[2]{0}', space=sflag, size = 0x8, scoped, tag = 'scoped memory for classifier_forward.1']
    %13 = vsyncpa [#allocation3], 0
    %s14 = scalar_lea.sflag [#allocation3], 1
    %15 = vsyncpa %s14, 0
    loop: start=0, step=1, limit=4
    $region2: #{classifier_forward.1} parent=1 // loop_pre_header
      _
    $region3: #{classifier_forward.1} parent=1 // loop_header
      %s17 = sphi 0, %s21
      %p18 = scmp.ge.s32.totalorder %s17, 4
      %s27 = sphi 0, %s29
      %s30 = sphi 0, %s27
      %s31 = sphi 0, %s30
      %s47 = sphi 0, %s31
      %s51 = sphi 0, %s51
      %s53 = sphi 0, %s51
      %s54 = sphi 0, %s53
      %s68 = sphi 0, %s54
      %s72 = sphi 0, %s72
      %s74 = sphi 0, %s72
      %s75 = sphi 0, %s74
      %s89 = sphi 0, %s75
      %s93 = sphi 0, %s93
      %s95 = sphi 0, %s93
      %s96 = sphi 0, %s95
      %s110 = sphi 0, %s96
      %s114 = sphi 0, %s114
      %s116 = sphi 0, %s114
      %s117 = sphi 0, %s116
      %s131 = sphi 0, %s117
      %s135 = sphi 0, %s135
      %s137 = sphi 0, %s135
      %s138 = sphi 0, %s137
      %s152 = sphi 0, %s138
      %s156 = sphi 0, %s156
      %s158 = sphi 0, %s156
      %s159 = sphi 0, %s158
      %s173 = sphi 0, %s159
      %s177 = sphi 0, %s177
      %s179 = sphi 0, %s177
      %s180 = sphi 0, %s179
      %s194 = sphi 0, %s180
      %s200 = sphi 0, %s202
      %s203 = sphi 0, %s200
      %s204 = sphi 0, %s203
      %s220 = sphi 0, %s204
    $region4: #{classifier_forward.1} parent=1 // loop_header_branch
      %20 = sbr.rel (%p18) target = $region8
    $region5: #{classifier_forward.1} parent=1 // loop_body
      %s22 = ssub.s32 %s17, 1
      %s23 = ssub.s32 %s17, 2
      %s24 = sadd.s32 %s17, 1
      %s25 = ssub.s32 %s17, %s24
      %p26 = scmp.eq.s32.totalorder %s25, 0
      %s28 = sadd.s32 %s27, 1
      %s29 = scalar_select %p26, %s27, %s28
      %p32 = pneg %p26
      %p33 = scmp.eq.s32.totalorder %s17, 1
      %p34 = por %p32, %p33
      %p35 = scmp.ne.s32.totalorder %s27, %s30
      %p36 = scmp.eq.s32.totalorder %s17, 0
      %p37 = por %p35, %p36
      %p38 = scmp.ne.s32.totalorder %s27, %s30
      %p39 = scmp.eq.s32.totalorder %s22, 1
      %p40 = por %p38, %p39
      %p41 = scmp.ne.s32.totalorder %s30, %s31
      %p42 = scmp.eq.s32.totalorder %s22, 0
      %p43 = por %p41, %p42
      %p44 = scmp.ne.s32.totalorder %s30, %s31
      %p45 = scmp.eq.s32.totalorder %s23, 1
      %p46 = por %p44, %p45
      %p48 = scmp.ne.s32.totalorder %s31, %s47
      %p49 = scmp.eq.s32.totalorder %s23, 0
      %p50 = por %p48, %p49
      %s52 = sadd.s32 %s51, 1
      %p55 = scmp.eq.s32.totalorder %s17, 1
      %p56 = scmp.ne.s32.totalorder %s51, %s53
      %p57 = scmp.eq.s32.totalorder %s17, 0
      %p58 = por %p56, %p57
      %p59 = scmp.ne.s32.totalorder %s51, %s53
      %p60 = scmp.eq.s32.totalorder %s22, 1
      %p61 = por %p59, %p60
      %p62 = scmp.ne.s32.totalorder %s53, %s54
      %p63 = scmp.eq.s32.totalorder %s22, 0
      %p64 = por %p62, %p63
      %p65 = scmp.ne.s32.totalorder %s53, %s54
      %p66 = scmp.eq.s32.totalorder %s23, 1
      %p67 = por %p65, %p66
      %p69 = scmp.ne.s32.totalorder %s54, %s68
      %p70 = scmp.eq.s32.totalorder %s23, 0
      %p71 = por %p69, %p70
      %s73 = sadd.s32 %s72, 1
      %p76 = scmp.eq.s32.totalorder %s17, 1
      %p77 = scmp.ne.s32.totalorder %s72, %s74
      %p78 = scmp.eq.s32.totalorder %s17, 0
      %p79 = por %p77, %p78
      %p80 = scmp.ne.s32.totalorder %s72, %s74
      %p81 = scmp.eq.s32.totalorder %s22, 1
      %p82 = por %p80, %p81
      %p83 = scmp.ne.s32.totalorder %s74, %s75
      %p84 = scmp.eq.s32.totalorder %s22, 0
      %p85 = por %p83, %p84
      %p86 = scmp.ne.s32.totalorder %s74, %s75
      %p87 = scmp.eq.s32.totalorder %s23, 1
      %p88 = por %p86, %p87
      %p90 = scmp.ne.s32.totalorder %s75, %s89
      %p91 = scmp.eq.s32.totalorder %s23, 0
      %p92 = por %p90, %p91
      %s94 = sadd.s32 %s93, 1
      %p97 = scmp.eq.s32.totalorder %s17, 1
      %p98 = scmp.ne.s32.totalorder %s93, %s95
      %p99 = scmp.eq.s32.totalorder %s17, 0
      %p100 = por %p98, %p99
      %p101 = scmp.ne.s32.totalorder %s93, %s95
      %p102 = scmp.eq.s32.totalorder %s22, 1
      %p103 = por %p101, %p102
      %p104 = scmp.ne.s32.totalorder %s95, %s96
      %p105 = scmp.eq.s32.totalorder %s22, 0
      %p106 = por %p104, %p105
      %p107 = scmp.ne.s32.totalorder %s95, %s96
      %p108 = scmp.eq.s32.totalorder %s23, 1
      %p109 = por %p107, %p108
      %p111 = scmp.ne.s32.totalorder %s96, %s110
      %p112 = scmp.eq.s32.totalorder %s23, 0
      %p113 = por %p111, %p112
      %s115 = sadd.s32 %s114, 1
      %p118 = scmp.eq.s32.totalorder %s17, 1
      %p119 = scmp.ne.s32.totalorder %s114, %s116
      %p120 = scmp.eq.s32.totalorder %s17, 0
      %p121 = por %p119, %p120
      %p122 = scmp.ne.s32.totalorder %s114, %s116
      %p123 = scmp.eq.s32.totalorder %s22, 1
      %p124 = por %p122, %p123
      %p125 = scmp.ne.s32.totalorder %s116, %s117
      %p126 = scmp.eq.s32.totalorder %s22, 0
      %p127 = por %p125, %p126
      %p128 = scmp.ne.s32.totalorder %s116, %s117
      %p129 = scmp.eq.s32.totalorder %s23, 1
      %p130 = por %p128, %p129
      %p132 = scmp.ne.s32.totalorder %s117, %s131
      %p133 = scmp.eq.s32.totalorder %s23, 0
      %p134 = por %p132, %p133
      %s136 = sadd.s32 %s135, 1
      %p139 = scmp.eq.s32.totalorder %s17, 1
      %p140 = scmp.ne.s32.totalorder %s135, %s137
      %p141 = scmp.eq.s32.totalorder %s17, 0
      %p142 = por %p140, %p141
      %p143 = scmp.ne.s32.totalorder %s135, %s137
      %p144 = scmp.eq.s32.totalorder %s22, 1
      %p145 = por %p143, %p144
      %p146 = scmp.ne.s32.totalorder %s137, %s138
      %p147 = scmp.eq.s32.totalorder %s22, 0
      %p148 = por %p146, %p147
      %p149 = scmp.ne.s32.totalorder %s137, %s138
      %p150 = scmp.eq.s32.totalorder %s23, 1
      %p151 = por %p149, %p150
      %p153 = scmp.ne.s32.totalorder %s138, %s152
      %p154 = scmp.eq.s32.totalorder %s23, 0
      %p155 = por %p153, %p154
      %s157 = sadd.s32 %s156, 1
      %p160 = scmp.eq.s32.totalorder %s17, 1
      %p161 = scmp.ne.s32.totalorder %s156, %s158
      %p162 = scmp.eq.s32.totalorder %s17, 0
      %p163 = por %p161, %p162
      %p164 = scmp.ne.s32.totalorder %s156, %s158
      %p165 = scmp.eq.s32.totalorder %s22, 1
      %p166 = por %p164, %p165
      %p167 = scmp.ne.s32.totalorder %s158, %s159
      %p168 = scmp.eq.s32.totalorder %s22, 0
      %p169 = por %p167, %p168
      %p170 = scmp.ne.s32.totalorder %s158, %s159
      %p171 = scmp.eq.s32.totalorder %s23, 1
      %p172 = por %p170, %p171
      %p174 = scmp.ne.s32.totalorder %s159, %s173
      %p175 = scmp.eq.s32.totalorder %s23, 0
      %p176 = por %p174, %p175
      %s178 = sadd.s32 %s177, 1
      %p181 = scmp.eq.s32.totalorder %s17, 1
      %p182 = scmp.ne.s32.totalorder %s177, %s179
      %p183 = scmp.eq.s32.totalorder %s17, 0
      %p184 = por %p182, %p183
      %p185 = scmp.ne.s32.totalorder %s177, %s179
      %p186 = scmp.eq.s32.totalorder %s22, 1
      %p187 = por %p185, %p186
      %p188 = scmp.ne.s32.totalorder %s179, %s180
      %p189 = scmp.eq.s32.totalorder %s22, 0
      %p190 = por %p188, %p189
      %p191 = scmp.ne.s32.totalorder %s179, %s180
      %p192 = scmp.eq.s32.totalorder %s23, 1
      %p193 = por %p191, %p192
      %p195 = scmp.ne.s32.totalorder %s180, %s194
      %p196 = scmp.eq.s32.totalorder %s23, 0
      %p197 = por %p195, %p196
      %s198 = ssub.s32 %s17, %s24
      %p199 = scmp.eq.s32.totalorder %s198, 0
      %s201 = sadd.s32 %s200, 1
      %s202 = scalar_select %p199, %s200, %s201
      %p205 = pneg %p199
      %p206 = scmp.eq.s32.totalorder %s17, 1
      %p207 = por %p205, %p206
      %p208 = scmp.ne.s32.totalorder %s200, %s203
      %p209 = scmp.eq.s32.totalorder %s17, 0
      %p210 = por %p208, %p209
      %p211 = scmp.ne.s32.totalorder %s200, %s203
      %p212 = scmp.eq.s32.totalorder %s22, 1
      %p213 = por %p211, %p212
      %p214 = scmp.ne.s32.totalorder %s203, %s204
      %p215 = scmp.eq.s32.totalorder %s22, 0
      %p216 = por %p214, %p215
      %p217 = scmp.ne.s32.totalorder %s203, %s204
      %p218 = scmp.eq.s32.totalorder %s23, 1
      %p219 = por %p217, %p218
      %p221 = scmp.ne.s32.totalorder %s204, %s220
      %p222 = scmp.eq.s32.totalorder %s23, 0
      %p223 = por %p221, %p222
      %p224 = scmp.le.s32.totalorder 1, %s17
      %p225 = scmp.lt.s32.totalorder %s17, 3
      %p226 = pnand %p224, %p225
      %p227 = pneg %p226
      // Predicated region
      $region9: #{classifier_forward.1} parent=5 // pred_check
        _
      $region10: #{classifier_forward.1} parent=5 // pred_check_branch
        %229 = sbr.rel (%p226) target = $region12
      $region11: #{classifier_forward.1} parent=5 // pred_region
        %s230 = ssub.s32 %s17, 1
        // Predicated region
        $region13: #{classifier_forward.1} parent=11 // pred_check
          %p231 = pneg %p64
        $region14: #{classifier_forward.1} parent=11 // pred_check_branch
          %233 = sbr.rel (%p231) target = $region16
        $region15: #{classifier_forward.1} parent=11 // pred_region
          _
        $region16: #{classifier_forward.1} parent=11 // pred_fallthru
          _
        // Predicated region
        $region17: #{classifier_forward.1} parent=11 // pred_check
          %p234 = pneg %p85
        $region18: #{classifier_forward.1} parent=11 // pred_check_branch
          %236 = sbr.rel (%p234) target = $region20
        $region19: #{classifier_forward.1} parent=11 // pred_region
          _
        $region20: #{classifier_forward.1} parent=11 // pred_fallthru
          _
        // Predicated region
        $region21: #{classifier_forward.1} parent=11 // pred_check
          %p237 = pneg %p106
        $region22: #{classifier_forward.1} parent=11 // pred_check_branch
          %239 = sbr.rel (%p237) target = $region24
        $region23: #{classifier_forward.1} parent=11 // pred_region
          _
        $region24: #{classifier_forward.1} parent=11 // pred_fallthru
          _
        // Predicated region
        $region25: #{classifier_forward.1} parent=11 // pred_check
          %p240 = pneg %p127
        $region26: #{classifier_forward.1} parent=11 // pred_check_branch
          %242 = sbr.rel (%p240) target = $region28
        $region27: #{classifier_forward.1} parent=11 // pred_region
          _
        $region28: #{classifier_forward.1} parent=11 // pred_fallthru
          _
        // Predicated region
        $region29: #{classifier_forward.1} parent=11 // pred_check
          %p243 = pneg %p148
        $region30: #{classifier_forward.1} parent=11 // pred_check_branch
          %245 = sbr.rel (%p243) target = $region32
        $region31: #{classifier_forward.1} parent=11 // pred_region
          _
        $region32: #{classifier_forward.1} parent=11 // pred_fallthru
          _
        // Predicated region
        $region33: #{classifier_forward.1} parent=11 // pred_check
          %p246 = pneg %p169
        $region34: #{classifier_forward.1} parent=11 // pred_check_branch
          %248 = sbr.rel (%p246) target = $region36
        $region35: #{classifier_forward.1} parent=11 // pred_region
          _
        $region36: #{classifier_forward.1} parent=11 // pred_fallthru
          _
        // Predicated region
        $region37: #{classifier_forward.1} parent=11 // pred_check
          %p249 = pneg %p190
        $region38: #{classifier_forward.1} parent=11 // pred_check_branch
          %251 = sbr.rel (%p249) target = $region40
        $region39: #{classifier_forward.1} parent=11 // pred_region
          _
        $region40: #{classifier_forward.1} parent=11 // pred_fallthru
          _
      $region12: #{classifier_forward.1} parent=5 // pred_fallthru
        _
      %p252 = scmp.lt.s32.totalorder %s17, 2
      // Predicated region
      $region41: #{classifier_forward.1} parent=5 // pred_check
        %p253 = pneg %p252
      $region42: #{classifier_forward.1} parent=5 // pred_check_branch
        %255 = sbr.rel (%p253) target = $region44
      $region43: #{classifier_forward.1} parent=5 // pred_region
        // Predicated region
        $region45: #{classifier_forward.1} parent=43 // pred_check
          %p256 = pneg %p37
        $region46: #{classifier_forward.1} parent=43 // pred_check_branch
          %258 = sbr.rel (%p256) target = $region48
        $region47: #{classifier_forward.1} parent=43 // pred_region
          %p259 = scmp.lt.s32.totalorder %s17, 1
          %s260 = scalar_select %p259, %s17, 1
          %s261 = smul.addr %s260, 5
          %s262 = smul.addr %s261, 4
          %s263 = scalar_lea.vmem %s0, %s262
        $region48: #{classifier_forward.1} parent=43 // pred_fallthru
          _
      $region44: #{classifier_forward.1} parent=5 // pred_fallthru
        _
      %p264 = scmp.le.s32.totalorder 1, %s17
      %p265 = scmp.lt.s32.totalorder %s17, 3
      %p266 = pnand %p264, %p265
      %p267 = pneg %p266
      // Predicated region
      $region49: #{classifier_forward.1} parent=5 // pred_check
        _
      $region50: #{classifier_forward.1} parent=5 // pred_check_branch
        %269 = sbr.rel (%p266) target = $region52
      $region51: #{classifier_forward.1} parent=5 // pred_region
        %s270 = ssub.s32 %s17, 1
        %p271 = scmp.lt.s32.totalorder %s22, 1
        %s272 = scalar_select %p271, %s22, 1
        %s273 = smul.addr %s272, 5
        %s274 = smul.addr %s273, 4
        %s275 = scalar_lea.vmem %s0, %s274
        %p276 = pneg %p43
        %p277 = pneg %p40
        %p278 = pneg %p64
        %p279 = pneg %p61
        %p280 = pneg %p85
        %p281 = pneg %p82
        %p282 = pneg %p106
        %p283 = pneg %p103
        %p284 = pneg %p127
        %p285 = pneg %p124
        %p286 = pneg %p148
        %p287 = pneg %p145
        %p288 = pneg %p169
        %p289 = pneg %p166
        %p290 = pneg %p190
        %p291 = pneg %p187
        %p292 = pneg %p216
        %p293 = pneg %p213
        %s294 = sand.u32 %s203, 1
        %s295 = scalar_lea.sflag [#allocation3], %s294
        %s296 = sand.u32 %s203, 1
        %s297 = scalar_lea.vmem [#allocation2], %s296
        %p298 = scmp.lt.s32.totalorder %s22, 1
        %s299 = scalar_select %p298, %s22, 1
        %s300 = smul.addr %s299, 5
        %s301 = smul.addr %s300, 4
        %s302 = scalar_lea.vmem %s0, %s301
        %v304 = vld [vmem:[%s7] sm:$0xff]
        %v305 = vld [vmem:[%s7 + $0x8] sm:$0xff]
        %v306 = vld [vmem:[%s7 + $0x10] sm:$0xff]
        %v307 = vld [vmem:[%s7 + $0x18] sm:$0xff]
        %v308 = vld [vmem:[%s7 + $0x20] sm:$0xff]
        %v309 = vld [vmem:[%s7 + $0x28] sm:$0xff]
        %v310 = vld [vmem:[%s302] sm:$0xff]
        %v311 = vld [vmem:[%s302 + $0x8] sm:$0xff]
        %v312 = vld [vmem:[%s302 + $0x10] sm:$0xf]
        %v313 = vld [vmem:[%s1] sm:$0xf]
        %v314 = vld [vmem:[%s1 + $0x4] sm:$0xf]
        %v315 = vld [vmem:[%s1 + $0x8] sm:$0xf]
        %v316 = vld [vmem:[%s1 + $0xc] sm:$0xf]
        %v317 = vld [vmem:[%s1 + $0x10] sm:$0xf]
        %v318 = vld [vmem:[%s1 + $0x14] sm:$0xf]
        %v319 = vld [vmem:[%s1 + $0x18] sm:$0xf]
        %v320 = vld [vmem:[%s1 + $0x1c] sm:$0xf]
        %v321 = vld [vmem:[%s1 + $0x20] sm:$0xf]
        %v322 = vld [vmem:[%s1 + $0x24] sm:$0xf]
        %v323 = vld [vmem:[%s1 + $0x28] sm:$0xf]
        %v324 = vld [vmem:[%s1 + $0x2c] sm:$0xf]
        %v325 = vld [vmem:[%s1 + $0x30] sm:$0xf]
        %v326 = vld [vmem:[%s1 + $0x34] sm:$0xf]
        %v327 = vld [vmem:[%s1 + $0x38] sm:$0xf]
        %v328 = vld [vmem:[%s1 + $0x3c] sm:$0xf]
        %v329 = vld [vmem:[%s1 + $0x40] sm:$0xf]
        %v330 = vld [vmem:[%s1 + $0x44] sm:$0xf]
        %v331 = vld [vmem:[%s1 + $0x48] sm:$0xf]
        %v332 = vld [vmem:[%s1 + $0x4c] sm:$0xf]
        %v333 = vld [vmem:[%s1 + $0x50] sm:$0xf]
        %v334 = vld [vmem:[%s1 + $0x54] sm:$0xf]
        %v335 = vld [vmem:[%s1 + $0x58] sm:$0xf]
        %v336 = vld [vmem:[%s1 + $0x5c] sm:$0xf]
        %v337 = vld [vmem:[%s1 + $0x60] sm:$0xf]
        %v338 = vld [vmem:[%s1 + $0x64] sm:$0xf]
        %v339 = vld [vmem:[%s1 + $0x68] sm:$0xf]
        %v340 = vld [vmem:[%s1 + $0x6c] sm:$0xf]
        %v341 = vld [vmem:[%s1 + $0x70] sm:$0xf]
        %v342 = vld [vmem:[%s1 + $0x74] sm:$0xf]
        %v343 = vld [vmem:[%s1 + $0x78] sm:$0xf]
        %v344 = vld [vmem:[%s1 + $0x7c] sm:$0xf]
        %v345 = vld [vmem:[%s1 + $0x80] sm:$0xf]
        %v346 = vld [vmem:[%s1 + $0x84] sm:$0xf]
        %v347 = vld [vmem:[%s1 + $0x88] sm:$0xf]
        %v348 = vld [vmem:[%s1 + $0x8c] sm:$0xf]
        %v349 = vld [vmem:[%s1 + $0x90] sm:$0xf]
        %v350 = vld [vmem:[%s1 + $0x94] sm:$0xf]
        %v351 = vld [vmem:[%s1 + $0x98] sm:$0xf]
        %v352 = vld [vmem:[%s1 + $0x9c] sm:$0xf]
        %v353 = vld [vmem:[%s1 + $0xa0] sm:$0xf]
        %v354 = vld [vmem:[%s1 + $0xa4] sm:$0xf]
        %v355 = vld [vmem:[%s1 + $0xa8] sm:$0xf]
        %v356 = vld [vmem:[%s1 + $0xac] sm:$0xf]
        %v357 = vld [vmem:[%s1 + $0xb0] sm:$0xf]
        %v358 = vld [vmem:[%s1 + $0xb4] sm:$0xf]
        %v359 = vld [vmem:[%s1 + $0xb8] sm:$0xf]
        %v360 = vld [vmem:[%s1 + $0xbc] sm:$0xf]
        %v361 = vld [vmem:[%s1 + $0xc0] sm:$0xf]
        %v362 = vld [vmem:[%s1 + $0xc4] sm:$0xf]
        %v363 = vld [vmem:[%s1 + $0xc8] sm:$0xf]
        %v364 = vld [vmem:[%s1 + $0xcc] sm:$0xf]
        %v365 = vld [vmem:[%s1 + $0xd0] sm:$0xf]
        %v366 = vld [vmem:[%s1 + $0xd4] sm:$0xf]
        %v367 = vld [vmem:[%s1 + $0xd8] sm:$0xf]
        %v368 = vld [vmem:[%s1 + $0xdc] sm:$0xf]
        %v369 = vld [vmem:[%s1 + $0xe0] sm:$0xf]
        %v370 = vld [vmem:[%s1 + $0xe4] sm:$0xf]
        %v371 = vld [vmem:[%s1 + $0xe8] sm:$0xf]
        %v372 = vld [vmem:[%s1 + $0xec] sm:$0xf]
        %v373 = vld [vmem:[%s1 + $0xf0] sm:$0xf]
        %v374 = vld [vmem:[%s1 + $0xf4] sm:$0xf]
        %v375 = vld [vmem:[%s1 + $0xf8] sm:$0xf]
        %v376 = vld [vmem:[%s1 + $0xfc] sm:$0xf]
        %v377 = vld [vmem:[%s1 + $0x100] sm:$0xf]
        %v378 = vld [vmem:[%s1 + $0x104] sm:$0xf]
        %v379 = vld [vmem:[%s1 + $0x108] sm:$0xf]
        %v380 = vld [vmem:[%s1 + $0x10c] sm:$0xf]
        %v381 = vld [vmem:[%s1 + $0x110] sm:$0xf]
        %v382 = vld [vmem:[%s1 + $0x114] sm:$0xf]
        %v383 = vld [vmem:[%s1 + $0x118] sm:$0xf]
        %v384 = vld [vmem:[%s1 + $0x11c] sm:$0xf]
        %v385 = vld [vmem:[%s1 + $0x120] sm:$0xf]
        %v386 = vld [vmem:[%s1 + $0x124] sm:$0xf]
        %v387 = vld [vmem:[%s1 + $0x128] sm:$0xf]
        %v388 = vld [vmem:[%s1 + $0x12c] sm:$0xf]
        %v389 = vld [vmem:[%s1 + $0x130] sm:$0xf]
        %v390 = vld [vmem:[%s1 + $0x134] sm:$0xf]
        %v391 = vld [vmem:[%s1 + $0x138] sm:$0xf]
        %v392 = vld [vmem:[%s1 + $0x13c] sm:$0xf]
        %v396 = vunpack.c.l.b16 %v310
        %v397 = vunpack.c.h.b16 %v310
        %v398 = vunpack.c.l.b16 %v311
        %v399 = vunpack.c.h.b16 %v311
        %v400 = vunpack.c.l.b16 %v312
        %v401 = vpack.c.b16 %v396, %v396
        %v402 = vpack.c.b16 %v397, %v397
        %v403 = vpack.c.b16 %v398, %v398
        %v404 = vpack.c.b16 %v399, %v399
        %v405 = vpack.c.b16 %v400, %v400
        %v491 = vunpack.c.l.b16 %v313
        %v492 = vunpack.c.l.b16 %v314
        %v493 = vunpack.c.l.b16 %v315
        %v494 = vunpack.c.l.b16 %v316
        %v495 = vunpack.c.l.b16 %v317
        %v496 = vunpack.c.l.b16 %v318
        %v497 = vunpack.c.l.b16 %v319
        %v498 = vunpack.c.l.b16 %v320
        %v499 = vunpack.c.l.b16 %v321
        %v500 = vunpack.c.l.b16 %v322
        %v501 = vunpack.c.l.b16 %v323
        %v502 = vunpack.c.l.b16 %v324
        %v503 = vunpack.c.l.b16 %v325
        %v504 = vunpack.c.l.b16 %v326
        %v505 = vunpack.c.l.b16 %v327
        %v506 = vunpack.c.l.b16 %v328
        %v507 = vunpack.c.l.b16 %v329
        %v508 = vunpack.c.l.b16 %v330
        %v509 = vunpack.c.l.b16 %v331
        %v510 = vunpack.c.l.b16 %v332
        %v511 = vunpack.c.l.b16 %v333
        %v512 = vunpack.c.l.b16 %v334
        %v513 = vunpack.c.l.b16 %v335
        %v514 = vunpack.c.l.b16 %v336
        %v515 = vunpack.c.l.b16 %v337
        %v516 = vunpack.c.l.b16 %v338
        %v517 = vunpack.c.l.b16 %v339
        %v518 = vunpack.c.l.b16 %v340
        %v519 = vunpack.c.l.b16 %v341
        %v520 = vunpack.c.l.b16 %v342
        %v521 = vunpack.c.l.b16 %v343
        %v522 = vunpack.c.l.b16 %v344
        %v523 = vunpack.c.l.b16 %v345
        %v524 = vunpack.c.l.b16 %v346
        %v525 = vunpack.c.l.b16 %v347
        %v526 = vunpack.c.l.b16 %v348
        %v527 = vunpack.c.l.b16 %v349
        %v528 = vunpack.c.l.b16 %v350
        %v529 = vunpack.c.l.b16 %v351
        %v530 = vunpack.c.l.b16 %v352
        %v531 = vunpack.c.l.b16 %v353
        %v532 = vunpack.c.l.b16 %v354
        %v533 = vunpack.c.l.b16 %v355
        %v534 = vunpack.c.l.b16 %v356
        %v535 = vunpack.c.l.b16 %v357
        %v536 = vunpack.c.l.b16 %v358
        %v537 = vunpack.c.l.b16 %v359
        %v538 = vunpack.c.l.b16 %v360
        %v539 = vunpack.c.l.b16 %v361
        %v540 = vunpack.c.l.b16 %v362
        %v541 = vunpack.c.l.b16 %v363
        %v542 = vunpack.c.l.b16 %v364
        %v543 = vunpack.c.l.b16 %v365
        %v544 = vunpack.c.l.b16 %v366
        %v545 = vunpack.c.l.b16 %v367
        %v546 = vunpack.c.l.b16 %v368
        %v547 = vunpack.c.l.b16 %v369
        %v548 = vunpack.c.l.b16 %v370
        %v549 = vunpack.c.l.b16 %v371
        %v550 = vunpack.c.l.b16 %v372
        %v551 = vunpack.c.l.b16 %v373
        %v552 = vunpack.c.l.b16 %v374
        %v553 = vunpack.c.l.b16 %v375
        %v554 = vunpack.c.l.b16 %v376
        %v555 = vunpack.c.l.b16 %v377
        %v556 = vunpack.c.l.b16 %v378
        %v557 = vunpack.c.l.b16 %v379
        %v558 = vunpack.c.l.b16 %v380
        %v559 = vunpack.c.l.b16 %v381
        %v560 = vunpack.c.l.b16 %v382
        %v561 = vunpack.c.l.b16 %v383
        %v562 = vunpack.c.l.b16 %v384
        %v563 = vunpack.c.l.b16 %v385
        %v564 = vunpack.c.l.b16 %v386
        %v565 = vunpack.c.l.b16 %v387
        %v566 = vunpack.c.l.b16 %v388
        %v567 = vunpack.c.l.b16 %v389
        %v568 = vunpack.c.l.b16 %v390
        %v569 = vunpack.c.l.b16 %v391
        %v570 = vunpack.c.l.b16 %v392
        %v571 = vpack.c.b16 %v492, %v491
        %v572 = vpack.c.b16 %v494, %v493
        %v573 = vpack.c.b16 %v496, %v495
        %v574 = vpack.c.b16 %v498, %v497
        %v575 = vpack.c.b16 %v500, %v499
        %v576 = vpack.c.b16 %v502, %v501
        %v577 = vpack.c.b16 %v504, %v503
        %v578 = vpack.c.b16 %v506, %v505
        %v579 = vpack.c.b16 %v508, %v507
        %v580 = vpack.c.b16 %v510, %v509
        %v581 = vpack.c.b16 %v512, %v511
        %v582 = vpack.c.b16 %v514, %v513
        %v583 = vpack.c.b16 %v516, %v515
        %v584 = vpack.c.b16 %v518, %v517
        %v585 = vpack.c.b16 %v520, %v519
        %v586 = vpack.c.b16 %v522, %v521
        %v587 = vpack.c.b16 %v524, %v523
        %v588 = vpack.c.b16 %v526, %v525
        %v589 = vpack.c.b16 %v528, %v527
        %v590 = vpack.c.b16 %v530, %v529
        %v591 = vpack.c.b16 %v532, %v531
        %v592 = vpack.c.b16 %v534, %v533
        %v593 = vpack.c.b16 %v536, %v535
        %v594 = vpack.c.b16 %v538, %v537
        %v595 = vpack.c.b16 %v540, %v539
        %v596 = vpack.c.b16 %v542, %v541
        %v597 = vpack.c.b16 %v544, %v543
        %v598 = vpack.c.b16 %v546, %v545
        %v599 = vpack.c.b16 %v548, %v547
        %v600 = vpack.c.b16 %v550, %v549
        %v601 = vpack.c.b16 %v552, %v551
        %v602 = vpack.c.b16 %v554, %v553
        %v603 = vpack.c.b16 %v556, %v555
        %v604 = vpack.c.b16 %v558, %v557
        %v605 = vpack.c.b16 %v560, %v559
        %v606 = vpack.c.b16 %v562, %v561
        %v607 = vpack.c.b16 %v564, %v563
        %v608 = vpack.c.b16 %v566, %v565
        %v609 = vpack.c.b16 %v568, %v567
        %v610 = vpack.c.b16 %v570, %v569
        %651 = vmatpush.bf16.msra.mxu0 %v578
        %652 = vmatpush.bf16.msra.mxu0 %v577
        %653 = vmatpush.bf16.msra.mxu0 %v576
        %654 = vmatpush.bf16.msra.mxu0 %v575
        %655 = vmatpush.bf16.msra.mxu0 %v574
        %656 = vmatpush.bf16.msra.mxu0 %v573
        %657 = vmatpush.bf16.msra.mxu0 %v572
        %658 = vmatpush.bf16.msra.mxu0 %v571
        %659 = vmatmul.bf16.gmra.mxu0 %v401
        %v660 = vpop.f32.mrf.mxu0
        %v661 = vadd.f32 0.0, %v660
        %v662 = vpop.f32.mrf.mxu0
        %663 = vdwg.mxu0
        %664 = vmatpush.bf16.msra.mxu0 %v586
        %665 = vmatpush.bf16.msra.mxu0 %v585
        %666 = vmatpush.bf16.msra.mxu0 %v584
        %667 = vmatpush.bf16.msra.mxu0 %v583
        %668 = vmatpush.bf16.msra.mxu0 %v582
        %669 = vmatpush.bf16.msra.mxu0 %v581
        %670 = vmatpush.bf16.msra.mxu0 %v580
        %671 = vmatpush.bf16.msra.mxu0 %v579
        %672 = vmatmul.bf16.gmra.mxu0 %v402
        %v673 = vpop.f32.mrf.mxu0
        %v674 = vadd.f32 %v661, %v673
        %v675 = vpop.f32.mrf.mxu0
        %676 = vdwg.mxu0
        %677 = vmatpush.bf16.msra.mxu0 %v594
        %678 = vmatpush.bf16.msra.mxu0 %v593
        %679 = vmatpush.bf16.msra.mxu0 %v592
        %680 = vmatpush.bf16.msra.mxu0 %v591
        %681 = vmatpush.bf16.msra.mxu0 %v590
        %682 = vmatpush.bf16.msra.mxu0 %v589
        %683 = vmatpush.bf16.msra.mxu0 %v588
        %684 = vmatpush.bf16.msra.mxu0 %v587
        %685 = vmatmul.bf16.gmra.mxu0 %v403
        %v686 = vpop.f32.mrf.mxu0
        %v687 = vadd.f32 %v674, %v686
        %v688 = vpop.f32.mrf.mxu0
        %689 = vdwg.mxu0
        %690 = vmatpush.bf16.msra.mxu0 %v602
        %691 = vmatpush.bf16.msra.mxu0 %v601
        %692 = vmatpush.bf16.msra.mxu0 %v600
        %693 = vmatpush.bf16.msra.mxu0 %v599
        %694 = vmatpush.bf16.msra.mxu0 %v598
        %695 = vmatpush.bf16.msra.mxu0 %v597
        %696 = vmatpush.bf16.msra.mxu0 %v596
        %697 = vmatpush.bf16.msra.mxu0 %v595
        %698 = vmatmul.bf16.gmra.mxu0 %v404
        %v699 = vpop.f32.mrf.mxu0
        %v700 = vadd.f32 %v687, %v699
        %v701 = vpop.f32.mrf.mxu0
        %702 = vdwg.mxu0
        %703 = vmatpush.bf16.msra.mxu0 %v610
        %704 = vmatpush.bf16.msra.mxu0 %v609
        %705 = vmatpush.bf16.msra.mxu0 %v608
        %706 = vmatpush.bf16.msra.mxu0 %v607
        %707 = vmatpush.bf16.msra.mxu0 %v606
        %708 = vmatpush.bf16.msra.mxu0 %v605
        %709 = vmatpush.bf16.msra.mxu0 %v604
        %710 = vmatpush.bf16.msra.mxu0 %v603
        %711 = vmatmul.bf16.gmra.mxu0 %v405
        %v712 = vpop.f32.mrf.mxu0
        %v713 = vadd.f32 %v700, %v712
        %v714 = vpop.f32.mrf.mxu0
        %715 = vdwg.mxu0
        %v716 = vadd.f32 %v713, %v304
        %v717 = vlaneseq
        %v718 = vand.u32 %v717, 127
        %vm719 = vcmp.lt.s32.totalorder %v718, 5
        %v720 = vsel %vm719, 0.0, -1e+30
        %vm721 = vcmask 261120
        %v722 = vsel %vm721, %v716, 0.0
        %723 = vadd.xlane.f32.xlu0 %v722
        %v724 = vpop.xlane.xlu0 %723
        %v725 = vrcp.pop 32.0
        %v726 = vmul.f32 32.0, %v725
        %v727 = vsub.f32 1.0, %v726
        %v728 = vmul.f32 %v725, %v727
        %v729 = vadd.f32 %v725, %v728
        %vm730 = vweird.f32 %v725
        %v731 = vsel %vm730, %v725, %v729
        %v732 = vmul.f32 %v724, %v731
        %v733 = vsub.f32 %v716, %v732
        %v734 = vmul.f32 %v733, %v733
        %v735 = vsel %vm721, %v734, 0.0
        %736 = vadd.xlane.f32.xlu0 %v735
        %v737 = vpop.xlane.xlu0 %736
        %v738 = vmul.f32 %v737, %v731
        %v739 = vadd.f32 %v738, 1e-06
        %v740 = vrsqrt.pop %v739
        %v741 = vmul.f32 %v740, %v739
        %v742 = vmul.f32 %v741, %v740
        %v743 = vmul.f32 0.5, %v742
        %v744 = vsub.f32 1.5, %v743
        %v745 = vmul.f32 %v740, %v744
        %vm746 = vweird.f32 %v739
        %vm747 = vweird.f32 %v740
        %vm748 = vmor %vm746, %vm747
        %v749 = vsel %vm748, %v740, %v745
        %v750 = vmul.f32 %v733, %v749
        %v751 = vperm.slane %v306, 0
        %v752 = vmul.f32 %v750, %v751
        %v753 = vperm.slane %v306, 1
        %v754 = vadd.f32 %v752, %v753
        %v755 = vpack.c.bf16 %v754, %v754
        %v756 = vld [vmem:[%s2] sm:$0xf]
        %v757 = vld [vmem:[%s2 + $0x4] sm:$0xf]
        %v758 = vld [vmem:[%s2 + $0x8] sm:$0xf]
        %v759 = vld [vmem:[%s2 + $0xc] sm:$0xf]
        %v760 = vperm.slane %v306, 2
        %v765 = vunpack.c.l.b16 %v756
        %v766 = vunpack.c.l.b16 %v757
        %v767 = vunpack.c.l.b16 %v758
        %v768 = vunpack.c.l.b16 %v759
        %v769 = vpack.c.b16 %v766, %v765
        %v770 = vpack.c.b16 %v768, %v767
        %v774 = vsel %vm721, %v755, 0
        %776 = vmatpush.bf16.msra.mxu0 0
        %777 = vmatpush.bf16.msra.mxu0 0
        %778 = vmatpush.bf16.msra.mxu0 0
        %779 = vmatpush.bf16.msra.mxu0 0
        %780 = vmatpush.bf16.msra.mxu0 0
        %781 = vmatpush.bf16.msra.mxu0 0
        %782 = vmatpush.bf16.msra.mxu0 %v770
        %783 = vmatpush.bf16.msra.mxu0 %v769
        %784 = vmatmul.bf16.gmra.mxu0 %v774
        %v785 = vpop.f32.mrf.mxu0
        %v786 = vadd.f32 %v760, %v785
        %v787 = vpop.f32.mrf.mxu0
        %788 = vdwg.mxu0
        %790 = vrot.lane.b32.xlu0 %v786, 120
        %v791 = vpop.permute.xlu0 %790
        %793 = vrot.lane.b32.xlu0 %v786, 112
        %v794 = vpop.permute.xlu0 %793
        %796 = vrot.lane.b32.xlu0 %v786, 104
        %v797 = vpop.permute.xlu0 %796
        %v799 = vpack.c.bf16 %v786, %v786
        %v800 = vpack.c.bf16 %v791, %v791
        %v801 = vpack.c.bf16 %v794, %v794
        %v802 = vpack.c.bf16 %v797, %v797
        %v804 = vunpack.c.l.b16 %v799
        %v805 = vpack.c.b16 %v804, %v804
        %806 = vrot.lane.b32.xlu0 %v805, 96
        %v807 = vpop.permute.xlu0 %806
        %vm808 = vcmask 64512
        %v810 = vsel %vm808, %v799, 0
        %v813 = vsel %vm808, %v807, 0
        %815 = vmatpush.bf16.xpose.msra.mxu0 0
        %816 = vmatpush.bf16.xpose.msra.mxu0 0
        %817 = vmatpush.bf16.xpose.msra.mxu0 0
        %818 = vmatpush.bf16.xpose.msra.mxu0 0
        %819 = vmatpush.bf16.xpose.msra.mxu0 0
        %820 = vmatpush.bf16.xpose.msra.mxu0 0
        %821 = vmatpush.bf16.xpose.msra.mxu0 0
        %822 = vmatpush.bf16.xpose.msra.mxu0 %v813
        %823 = vmatmul.bf16.gmra.mxu0 %v810
        %v824 = vpop.f32.mrf.mxu0
        %v825 = vadd.f32 %v720, %v824
        %v826 = vpop.f32.mrf.mxu0
        %827 = vdwg.mxu0
        %v829 = vunpack.c.l.b16 %v800
        %v830 = vpack.c.b16 %v829, %v829
        %831 = vrot.lane.b32.xlu0 %v830, 96
        %v832 = vpop.permute.xlu0 %831
        %v834 = vsel %vm808, %v800, 0
        %v837 = vsel %vm808, %v832, 0
        %839 = vmatpush.bf16.xpose.msra.mxu0 0
        %840 = vmatpush.bf16.xpose.msra.mxu0 0
        %841 = vmatpush.bf16.xpose.msra.mxu0 0
        %842 = vmatpush.bf16.xpose.msra.mxu0 0
        %843 = vmatpush.bf16.xpose.msra.mxu0 0
        %844 = vmatpush.bf16.xpose.msra.mxu0 0
        %845 = vmatpush.bf16.xpose.msra.mxu0 0
        %846 = vmatpush.bf16.xpose.msra.mxu0 %v837
        %847 = vmatmul.bf16.gmra.mxu0 %v834
        %v848 = vpop.f32.mrf.mxu0
        %v849 = vadd.f32 %v720, %v848
        %v850 = vpop.f32.mrf.mxu0
        %851 = vdwg.mxu0
        %v853 = vunpack.c.l.b16 %v801
        %v854 = vpack.c.b16 %v853, %v853
        %855 = vrot.lane.b32.xlu0 %v854, 96
        %v856 = vpop.permute.xlu0 %855
        %v858 = vsel %vm808, %v801, 0
        %v861 = vsel %vm808, %v856, 0
        %863 = vmatpush.bf16.xpose.msra.mxu0 0
        %864 = vmatpush.bf16.xpose.msra.mxu0 0
        %865 = vmatpush.bf16.xpose.msra.mxu0 0
        %866 = vmatpush.bf16.xpose.msra.mxu0 0
        %867 = vmatpush.bf16.xpose.msra.mxu0 0
        %868 = vmatpush.bf16.xpose.msra.mxu0 0
        %869 = vmatpush.bf16.xpose.msra.mxu0 0
        %870 = vmatpush.bf16.xpose.msra.mxu0 %v861
        %871 = vmatmul.bf16.gmra.mxu0 %v858
        %v872 = vpop.f32.mrf.mxu0
        %v873 = vadd.f32 %v720, %v872
        %v874 = vpop.f32.mrf.mxu0
        %875 = vdwg.mxu0
        %v877 = vunpack.c.l.b16 %v802
        %v878 = vpack.c.b16 %v877, %v877
        %879 = vrot.lane.b32.xlu0 %v878, 96
        %v880 = vpop.permute.xlu0 %879
        %v882 = vsel %vm808, %v802, 0
        %v885 = vsel %vm808, %v880, 0
        %887 = vmatpush.bf16.xpose.msra.mxu0 0
        %888 = vmatpush.bf16.xpose.msra.mxu0 0
        %889 = vmatpush.bf16.xpose.msra.mxu0 0
        %890 = vmatpush.bf16.xpose.msra.mxu0 0
        %891 = vmatpush.bf16.xpose.msra.mxu0 0
        %892 = vmatpush.bf16.xpose.msra.mxu0 0
        %893 = vmatpush.bf16.xpose.msra.mxu0 0
        %894 = vmatpush.bf16.xpose.msra.mxu0 %v885
        %895 = vmatmul.bf16.gmra.mxu0 %v882
        %v896 = vpop.f32.mrf.mxu0
        %v897 = vadd.f32 %v720, %v896
        %v898 = vpop.f32.mrf.mxu0
        %899 = vdwg.mxu0
        %v900 = vsel %vm808, %v825, -inf
        %901 = vmax.xlane.f32.xlu0 %v900
        %v902 = vpop.xlane.xlu0 %901
        %v903 = vsel %vm808, %v849, -inf
        %904 = vmax.xlane.f32.xlu0 %v903
        %v905 = vpop.xlane.xlu0 %904
        %v906 = vsel %vm808, %v873, -inf
        %907 = vmax.xlane.f32.xlu0 %v906
        %v908 = vpop.xlane.xlu0 %907
        %v909 = vsel %vm808, %v897, -inf
        %910 = vmax.xlane.f32.xlu0 %v909
        %v911 = vpop.xlane.xlu0 %910
        %v912 = vsub.f32 %v825, %v902
        %v913 = vsub.f32 %v849, %v905
        %v914 = vsub.f32 %v873, %v908
        %v915 = vsub.f32 %v897, %v911
        %v916 = vmul.f32 %v912, 1.442695
        %v917 = vpow.pop %v916
        %v918 = vmul.f32 %v913, 1.442695
        %v919 = vpow.pop %v918
        %v920 = vmul.f32 %v914, 1.442695
        %v921 = vpow.pop %v920
        %v922 = vmul.f32 %v915, 1.442695
        %v923 = vpow.pop %v922
        %v924 = vsel %vm808, %v917, 0.0
        %925 = vadd.xlane.f32.xlu0 %v924
        %v926 = vpop.xlane.xlu0 %925
        %v927 = vsel %vm808, %v919, 0.0
        %928 = vadd.xlane.f32.xlu0 %v927
        %v929 = vpop.xlane.xlu0 %928
        %v930 = vsel %vm808, %v921, 0.0
        %931 = vadd.xlane.f32.xlu0 %v930
        %v932 = vpop.xlane.xlu0 %931
        %v933 = vsel %vm808, %v923, 0.0
        %934 = vadd.xlane.f32.xlu0 %v933
        %v935 = vpop.xlane.xlu0 %934
        %v936 = vrcp.pop %v926
        %v937 = vrcp.pop %v929
        %v938 = vrcp.pop %v932
        %v939 = vrcp.pop %v935
        %v940 = vmul.f32 %v917, %v936
        %v941 = vmul.f32 %v919, %v937
        %v942 = vmul.f32 %v921, %v938
        %v943 = vmul.f32 %v923, %v939
        %v944 = vpack.c.bf16 %v940, %v940
        %v945 = vpack.c.bf16 %v941, %v941
        %v946 = vpack.c.bf16 %v942, %v942
        %v947 = vpack.c.bf16 %v943, %v943
        %948 = vrot.lane.b32.xlu0 %v805, 64
        %v949 = vpop.permute.xlu0 %948
        %v951 = vsel %vm808, %v944, 0
        %vm953 = vcmask 1043456
        %v955 = vsel %vm953, %v949, 0
        %957 = vmatpush.bf16.msra.mxu0 0
        %958 = vmatpush.bf16.msra.mxu0 0
        %959 = vmatpush.bf16.msra.mxu0 0
        %960 = vmatpush.bf16.msra.mxu0 0
        %961 = vmatpush.bf16.msra.mxu0 0
        %962 = vmatpush.bf16.msra.mxu0 0
        %963 = vmatpush.bf16.msra.mxu0 0
        %964 = vmatpush.bf16.msra.mxu0 %v955
        %965 = vmatmul.bf16.gmra.mxu0 %v951
        %v966 = vpop.f32.mrf.mxu0
        %v967 = vadd.f32 0.0, %v966
        %v968 = vpop.f32.mrf.mxu0
        %969 = vdwg.mxu0
        %970 = vrot.lane.b32.xlu0 %v830, 64
        %v971 = vpop.permute.xlu0 %970
        %v973 = vsel %vm808, %v945, 0
        %v976 = vsel %vm953, %v971, 0
        %978 = vmatpush.bf16.msra.mxu0 0
        %979 = vmatpush.bf16.msra.mxu0 0
        %980 = vmatpush.bf16.msra.mxu0 0
        %981 = vmatpush.bf16.msra.mxu0 0
        %982 = vmatpush.bf16.msra.mxu0 0
        %983 = vmatpush.bf16.msra.mxu0 0
        %984 = vmatpush.bf16.msra.mxu0 0
        %985 = vmatpush.bf16.msra.mxu0 %v976
        %986 = vmatmul.bf16.gmra.mxu0 %v973
        %v987 = vpop.f32.mrf.mxu0
        %v988 = vadd.f32 0.0, %v987
        %v989 = vpop.f32.mrf.mxu0
        %990 = vdwg.mxu0
        %991 = vrot.lane.b32.xlu0 %v854, 64
        %v992 = vpop.permute.xlu0 %991
        %v994 = vsel %vm808, %v946, 0
        %v997 = vsel %vm953, %v992, 0
        %999 = vmatpush.bf16.msra.mxu0 0
        %1000 = vmatpush.bf16.msra.mxu0 0
        %1001 = vmatpush.bf16.msra.mxu0 0
        %1002 = vmatpush.bf16.msra.mxu0 0
        %1003 = vmatpush.bf16.msra.mxu0 0
        %1004 = vmatpush.bf16.msra.mxu0 0
        %1005 = vmatpush.bf16.msra.mxu0 0
        %1006 = vmatpush.bf16.msra.mxu0 %v997
        %1007 = vmatmul.bf16.gmra.mxu0 %v994
        %v1008 = vpop.f32.mrf.mxu0
        %v1009 = vadd.f32 0.0, %v1008
        %v1010 = vpop.f32.mrf.mxu0
        %1011 = vdwg.mxu0
        %1012 = vrot.lane.b32.xlu0 %v878, 64
        %v1013 = vpop.permute.xlu0 %1012
        %v1015 = vsel %vm808, %v947, 0
        %v1018 = vsel %vm953, %v1013, 0
        %1020 = vmatpush.bf16.msra.mxu0 0
        %1021 = vmatpush.bf16.msra.mxu0 0
        %1022 = vmatpush.bf16.msra.mxu0 0
        %1023 = vmatpush.bf16.msra.mxu0 0
        %1024 = vmatpush.bf16.msra.mxu0 0
        %1025 = vmatpush.bf16.msra.mxu0 0
        %1026 = vmatpush.bf16.msra.mxu0 0
        %1027 = vmatpush.bf16.msra.mxu0 %v1018
        %1028 = vmatmul.bf16.gmra.mxu0 %v1015
        %v1029 = vpop.f32.mrf.mxu0
        %v1030 = vadd.f32 0.0, %v1029
        %v1031 = vpop.f32.mrf.mxu0
        %1032 = vdwg.mxu0
        %1034 = vrot.lane.b32.xlu0 %v988, 8
        %v1035 = vpop.permute.xlu0 %1034
        %1038 = vrot.lane.b32.xlu0 %v1009, 16
        %v1039 = vpop.permute.xlu0 %1038
        %1042 = vrot.lane.b32.xlu0 %v1030, 24
        %v1043 = vpop.permute.xlu0 %1042
        %v1045 = vsel %vm808, %v967, %v1035
        %vm1046 = vcmask 130048
        %v1047 = vsel %vm1046, %v1045, %v1039
        %vm1048 = vcmask 195584
        %v1049 = vsel %vm1048, %v1047, %v1043
        %v1050 = vpack.c.bf16 %v1049, %v1049
        %v1051 = vld [vmem:[%s3] sm:$0xf]
        %v1052 = vld [vmem:[%s3 + $0x4] sm:$0xf]
        %v1053 = vld [vmem:[%s3 + $0x8] sm:$0xf]
        %v1054 = vld [vmem:[%s3 + $0xc] sm:$0xf]
        %v1055 = vperm.slane %v306, 3
        %v1060 = vunpack.c.l.b16 %v1051
        %v1061 = vunpack.c.l.b16 %v1052
        %v1062 = vunpack.c.l.b16 %v1053
        %v1063 = vunpack.c.l.b16 %v1054
        %v1064 = vpack.c.b16 %v1061, %v1060
        %v1065 = vpack.c.b16 %v1063, %v1062
        %v1069 = vsel %vm721, %v1050, 0
        %1071 = vmatpush.bf16.msra.mxu0 0
        %1072 = vmatpush.bf16.msra.mxu0 0
        %1073 = vmatpush.bf16.msra.mxu0 0
        %1074 = vmatpush.bf16.msra.mxu0 0
        %1075 = vmatpush.bf16.msra.mxu0 0
        %1076 = vmatpush.bf16.msra.mxu0 0
        %1077 = vmatpush.bf16.msra.mxu0 %v1065
        %1078 = vmatpush.bf16.msra.mxu0 %v1064
        %1079 = vmatmul.bf16.gmra.mxu0 %v1069
        %v1080 = vpop.f32.mrf.mxu0
        %v1081 = vadd.f32 %v1055, %v1080
        %v1082 = vpop.f32.mrf.mxu0
        %1083 = vdwg.mxu0
        %v1084 = vperm.slane %v306, 4
        %v1085 = vmul.f32 %v1084, %v1081
        %v1086 = vadd.f32 %v716, %v1085
        %v1087 = vsel %vm721, %v1086, 0.0
        %1088 = vadd.xlane.f32.xlu0 %v1087
        %v1089 = vpop.xlane.xlu0 %1088
        %v1090 = vmul.f32 %v1089, %v731
        %v1091 = vsub.f32 %v1086, %v1090
        %v1092 = vmul.f32 %v1091, %v1091
        %v1093 = vsel %vm721, %v1092, 0.0
        %1094 = vadd.xlane.f32.xlu0 %v1093
        %v1095 = vpop.xlane.xlu0 %1094
        %v1096 = vmul.f32 %v1095, %v731
        %v1097 = vadd.f32 %v1096, 1e-06
        %v1098 = vrsqrt.pop %v1097
        %v1099 = vmul.f32 %v1098, %v1097
        %v1100 = vmul.f32 %v1099, %v1098
        %v1101 = vmul.f32 0.5, %v1100
        %v1102 = vsub.f32 1.5, %v1101
        %v1103 = vmul.f32 %v1098, %v1102
        %vm1104 = vweird.f32 %v1097
        %vm1105 = vweird.f32 %v1098
        %vm1106 = vmor %vm1104, %vm1105
        %v1107 = vsel %vm1106, %v1098, %v1103
        %v1108 = vmul.f32 %v1091, %v1107
        %v1109 = vperm.slane %v306, 5
        %v1110 = vmul.f32 %v1108, %v1109
        %v1111 = vperm.slane %v306, 6
        %v1112 = vadd.f32 %v1110, %v1111
        %v1113 = vpack.c.bf16 %v1112, %v1112
        %v1114 = vld [vmem:[%s4] sm:$0xf]
        %v1115 = vld [vmem:[%s4 + $0x4] sm:$0xf]
        %v1116 = vld [vmem:[%s4 + $0x8] sm:$0xf]
        %v1117 = vld [vmem:[%s4 + $0xc] sm:$0xf]
        %v1118 = vperm.slane %v306, 7
        %v1123 = vunpack.c.l.b16 %v1114
        %v1124 = vunpack.c.l.b16 %v1115
        %v1125 = vunpack.c.l.b16 %v1116
        %v1126 = vunpack.c.l.b16 %v1117
        %v1127 = vpack.c.b16 %v1124, %v1123
        %v1128 = vpack.c.b16 %v1126, %v1125
        %v1132 = vsel %vm721, %v1113, 0
        %1134 = vmatpush.bf16.msra.mxu0 0
        %1135 = vmatpush.bf16.msra.mxu0 0
        %1136 = vmatpush.bf16.msra.mxu0 0
        %1137 = vmatpush.bf16.msra.mxu0 0
        %1138 = vmatpush.bf16.msra.mxu0 0
        %1139 = vmatpush.bf16.msra.mxu0 0
        %1140 = vmatpush.bf16.msra.mxu0 %v1128
        %1141 = vmatpush.bf16.msra.mxu0 %v1127
        %1142 = vmatmul.bf16.gmra.mxu0 %v1132
        %v1143 = vpop.f32.mrf.mxu0
        %v1144 = vadd.f32 %v1118, %v1143
        %v1145 = vpop.f32.mrf.mxu0
        %1146 = vdwg.mxu0
        %v1147 = vmul.f32 %v1144, 0.5
        %v1148 = vmul.f32 %v1144, 0.044715
        %v1149 = vmul.f32 %v1148, %v1144
        %v1150 = vmul.f32 %v1149, %v1144
        %v1151 = vadd.f32 %v1144, %v1150
        %v1152 = vmul.f32 %v1151, 0.7978846
        %v1153 = vtanh.pop %v1152
        %v1154 = vadd.f32 %v1153, 1.0
        %v1155 = vmul.f32 %v1147, %v1154
        %v1156 = vpack.c.bf16 %v1155, %v1155
        %v1157 = vld [vmem:[%s5] sm:$0xf]
        %v1158 = vld [vmem:[%s5 + $0x4] sm:$0xf]
        %v1159 = vld [vmem:[%s5 + $0x8] sm:$0xf]
        %v1160 = vld [vmem:[%s5 + $0xc] sm:$0xf]
        %v1161 = vld [vmem:[%s5 + $0x10] sm:$0xf]
        %v1162 = vld [vmem:[%s5 + $0x14] sm:$0xf]
        %v1163 = vld [vmem:[%s5 + $0x18] sm:$0xf]
        %v1164 = vld [vmem:[%s5 + $0x1c] sm:$0xf]
        %v1165 = vld [vmem:[%s5 + $0x20] sm:$0xf]
        %v1166 = vld [vmem:[%s5 + $0x24] sm:$0xf]
        %v1167 = vld [vmem:[%s5 + $0x28] sm:$0xf]
        %v1168 = vld [vmem:[%s5 + $0x2c] sm:$0xf]
        %v1169 = vld [vmem:[%s5 + $0x30] sm:$0xf]
        %v1170 = vld [vmem:[%s5 + $0x34] sm:$0xf]
        %v1171 = vld [vmem:[%s5 + $0x38] sm:$0xf]
        %v1172 = vld [vmem:[%s5 + $0x3c] sm:$0xf]
        %v1173 = vperm.slane %v307, 0
        %v1190 = vunpack.c.l.b16 %v1157
        %v1191 = vunpack.c.l.b16 %v1158
        %v1192 = vunpack.c.l.b16 %v1159
        %v1193 = vunpack.c.l.b16 %v1160
        %v1194 = vunpack.c.l.b16 %v1161
        %v1195 = vunpack.c.l.b16 %v1162
        %v1196 = vunpack.c.l.b16 %v1163
        %v1197 = vunpack.c.l.b16 %v1164
        %v1198 = vunpack.c.l.b16 %v1165
        %v1199 = vunpack.c.l.b16 %v1166
        %v1200 = vunpack.c.l.b16 %v1167
        %v1201 = vunpack.c.l.b16 %v1168
        %v1202 = vunpack.c.l.b16 %v1169
        %v1203 = vunpack.c.l.b16 %v1170
        %v1204 = vunpack.c.l.b16 %v1171
        %v1205 = vunpack.c.l.b16 %v1172
        %v1206 = vpack.c.b16 %v1191, %v1190
        %v1207 = vpack.c.b16 %v1193, %v1192
        %v1208 = vpack.c.b16 %v1195, %v1194
        %v1209 = vpack.c.b16 %v1197, %v1196
        %v1210 = vpack.c.b16 %v1199, %v1198
        %v1211 = vpack.c.b16 %v1201, %v1200
        %v1212 = vpack.c.b16 %v1203, %v1202
        %v1213 = vpack.c.b16 %v1205, %v1204
        %1222 = vmatpush.bf16.msra.mxu0 %v1213
        %1223 = vmatpush.bf16.msra.mxu0 %v1212
        %1224 = vmatpush.bf16.msra.mxu0 %v1211
        %1225 = vmatpush.bf16.msra.mxu0 %v1210
        %1226 = vmatpush.bf16.msra.mxu0 %v1209
        %1227 = vmatpush.bf16.msra.mxu0 %v1208
        %1228 = vmatpush.bf16.msra.mxu0 %v1207
        %1229 = vmatpush.bf16.msra.mxu0 %v1206
        %1230 = vmatmul.bf16.gmra.mxu0 %v1156
        %v1231 = vpop.f32.mrf.mxu0
        %v1232 = vadd.f32 %v1173, %v1231
        %v1233 = vpop.f32.mrf.mxu0
        %1234 = vdwg.mxu0
        %v1235 = vperm.slane %v307, 1
        %v1236 = vmul.f32 %v1235, %v1232
        %v1237 = vadd.f32 %v1086, %v1236
        %v1238 = vsel %vm721, %v1237, 0.0
        %1239 = vadd.xlane.f32.xlu0 %v1238
        %v1240 = vpop.xlane.xlu0 %1239
        %v1241 = vmul.f32 %v1240, %v731
        %v1242 = vsub.f32 %v1237, %v1241
        %v1243 = vmul.f32 %v1242, %v1242
        %v1244 = vsel %vm721, %v1243, 0.0
        %1245 = vadd.xlane.f32.xlu0 %v1244
        %v1246 = vpop.xlane.xlu0 %1245
        %v1247 = vmul.f32 %v1246, %v731
        %v1248 = vadd.f32 %v1247, 1e-06
        %v1249 = vrsqrt.pop %v1248
        %v1250 = vmul.f32 %v1249, %v1248
        %v1251 = vmul.f32 %v1250, %v1249
        %v1252 = vmul.f32 0.5, %v1251
        %v1253 = vsub.f32 1.5, %v1252
        %v1254 = vmul.f32 %v1249, %v1253
        %vm1255 = vweird.f32 %v1248
        %vm1256 = vweird.f32 %v1249
        %vm1257 = vmor %vm1255, %vm1256
        %v1258 = vsel %vm1257, %v1249, %v1254
        %v1259 = vmul.f32 %v1242, %v1258
        %v1260 = vperm.slane %v308, 0
        %v1261 = vmul.f32 %v1259, %v1260
        %v1262 = vperm.slane %v308, 1
        %v1263 = vadd.f32 %v1261, %v1262
        %v1264 = vpack.c.bf16 %v1263, %v1263
        %s1265 = scalar_lea.vmem %s2, 16
        %v1266 = vld [vmem:[%s1265] sm:$0xf]
        %v1267 = vld [vmem:[%s1265 + $0x4] sm:$0xf]
        %v1268 = vld [vmem:[%s1265 + $0x8] sm:$0xf]
        %v1269 = vld [vmem:[%s1265 + $0xc] sm:$0xf]
        %v1270 = vperm.slane %v308, 2
        %v1275 = vunpack.c.l.b16 %v1266
        %v1276 = vunpack.c.l.b16 %v1267
        %v1277 = vunpack.c.l.b16 %v1268
        %v1278 = vunpack.c.l.b16 %v1269
        %v1279 = vpack.c.b16 %v1276, %v1275
        %v1280 = vpack.c.b16 %v1278, %v1277
        %v1284 = vsel %vm721, %v1264, 0
        %1286 = vmatpush.bf16.msra.mxu0 0
        %1287 = vmatpush.bf16.msra.mxu0 0
        %1288 = vmatpush.bf16.msra.mxu0 0
        %1289 = vmatpush.bf16.msra.mxu0 0
        %1290 = vmatpush.bf16.msra.mxu0 0
        %1291 = vmatpush.bf16.msra.mxu0 0
        %1292 = vmatpush.bf16.msra.mxu0 %v1280
        %1293 = vmatpush.bf16.msra.mxu0 %v1279
        %1294 = vmatmul.bf16.gmra.mxu0 %v1284
        %v1295 = vpop.f32.mrf.mxu0
        %v1296 = vadd.f32 %v1270, %v1295
        %v1297 = vpop.f32.mrf.mxu0
        %1298 = vdwg.mxu0
        %1300 = vrot.lane.b32.xlu0 %v1296, 120
        %v1301 = vpop.permute.xlu0 %1300
        %1303 = vrot.lane.b32.xlu0 %v1296, 112
        %v1304 = vpop.permute.xlu0 %1303
        %1306 = vrot.lane.b32.xlu0 %v1296, 104
        %v1307 = vpop.permute.xlu0 %1306
        %v1309 = vpack.c.bf16 %v1296, %v1296
        %v1310 = vpack.c.bf16 %v1301, %v1301
        %v1311 = vpack.c.bf16 %v1304, %v1304
        %v1312 = vpack.c.bf16 %v1307, %v1307
        %v1314 = vunpack.c.l.b16 %v1309
        %v1315 = vpack.c.b16 %v1314, %v1314
        %1316 = vrot.lane.b32.xlu0 %v1315, 96
        %v1317 = vpop.permute.xlu0 %1316
        %v1319 = vsel %vm808, %v1309, 0
        %v1322 = vsel %vm808, %v1317, 0
        %1324 = vmatpush.bf16.xpose.msra.mxu0 0
        %1325 = vmatpush.bf16.xpose.msra.mxu0 0
        %1326 = vmatpush.bf16.xpose.msra.mxu0 0
        %1327 = vmatpush.bf16.xpose.msra.mxu0 0
        %1328 = vmatpush.bf16.xpose.msra.mxu0 0
        %1329 = vmatpush.bf16.xpose.msra.mxu0 0
        %1330 = vmatpush.bf16.xpose.msra.mxu0 0
        %1331 = vmatpush.bf16.xpose.msra.mxu0 %v1322
        %1332 = vmatmul.bf16.gmra.mxu0 %v1319
        %v1333 = vpop.f32.mrf.mxu0
        %v1334 = vadd.f32 %v720, %v1333
        %v1335 = vpop.f32.mrf.mxu0
        %1336 = vdwg.mxu0
        %v1338 = vunpack.c.l.b16 %v1310
        %v1339 = vpack.c.b16 %v1338, %v1338
        %1340 = vrot.lane.b32.xlu0 %v1339, 96
        %v1341 = vpop.permute.xlu0 %1340
        %v1343 = vsel %vm808, %v1310, 0
        %v1346 = vsel %vm808, %v1341, 0
        %1348 = vmatpush.bf16.xpose.msra.mxu0 0
        %1349 = vmatpush.bf16.xpose.msra.mxu0 0
        %1350 = vmatpush.bf16.xpose.msra.mxu0 0
        %1351 = vmatpush.bf16.xpose.msra.mxu0 0
        %1352 = vmatpush.bf16.xpose.msra.mxu0 0
        %1353 = vmatpush.bf16.xpose.msra.mxu0 0
        %1354 = vmatpush.bf16.xpose.msra.mxu0 0
        %1355 = vmatpush.bf16.xpose.msra.mxu0 %v1346
        %1356 = vmatmul.bf16.gmra.mxu0 %v1343
        %v1357 = vpop.f32.mrf.mxu0
        %v1358 = vadd.f32 %v720, %v1357
        %v1359 = vpop.f32.mrf.mxu0
        %1360 = vdwg.mxu0
        %v1362 = vunpack.c.l.b16 %v1311
        %v1363 = vpack.c.b16 %v1362, %v1362
        %1364 = vrot.lane.b32.xlu0 %v1363, 96
        %v1365 = vpop.permute.xlu0 %1364
        %v1367 = vsel %vm808, %v1311, 0
        %v1370 = vsel %vm808, %v1365, 0
        %1372 = vmatpush.bf16.xpose.msra.mxu0 0
        %1373 = vmatpush.bf16.xpose.msra.mxu0 0
        %1374 = vmatpush.bf16.xpose.msra.mxu0 0
        %1375 = vmatpush.bf16.xpose.msra.mxu0 0
        %1376 = vmatpush.bf16.xpose.msra.mxu0 0
        %1377 = vmatpush.bf16.xpose.msra.mxu0 0
        %1378 = vmatpush.bf16.xpose.msra.mxu0 0
        %1379 = vmatpush.bf16.xpose.msra.mxu0 %v1370
        %1380 = vmatmul.bf16.gmra.mxu0 %v1367
        %v1381 = vpop.f32.mrf.mxu0
        %v1382 = vadd.f32 %v720, %v1381
        %v1383 = vpop.f32.mrf.mxu0
        %1384 = vdwg.mxu0
        %v1386 = vunpack.c.l.b16 %v1312
        %v1387 = vpack.c.b16 %v1386, %v1386
        %1388 = vrot.lane.b32.xlu0 %v1387, 96
        %v1389 = vpop.permute.xlu0 %1388
        %v1391 = vsel %vm808, %v1312, 0
        %v1394 = vsel %vm808, %v1389, 0
        %1396 = vmatpush.bf16.xpose.msra.mxu0 0
        %1397 = vmatpush.bf16.xpose.msra.mxu0 0
        %1398 = vmatpush.bf16.xpose.msra.mxu0 0
        %1399 = vmatpush.bf16.xpose.msra.mxu0 0
        %1400 = vmatpush.bf16.xpose.msra.mxu0 0
        %1401 = vmatpush.bf16.xpose.msra.mxu0 0
        %1402 = vmatpush.bf16.xpose.msra.mxu0 0
        %1403 = vmatpush.bf16.xpose.msra.mxu0 %v1394
        %1404 = vmatmul.bf16.gmra.mxu0 %v1391
        %v1405 = vpop.f32.mrf.mxu0
        %v1406 = vadd.f32 %v720, %v1405
        %v1407 = vpop.f32.mrf.mxu0
        %1408 = vdwg.mxu0
        %v1409 = vsel %vm808, %v1334, -inf
        %1410 = vmax.xlane.f32.xlu0 %v1409
        %v1411 = vpop.xlane.xlu0 %1410
        %v1412 = vsel %vm808, %v1358, -inf
        %1413 = vmax.xlane.f32.xlu0 %v1412
        %v1414 = vpop.xlane.xlu0 %1413
        %v1415 = vsel %vm808, %v1382, -inf
        %1416 = vmax.xlane.f32.xlu0 %v1415
        %v1417 = vpop.xlane.xlu0 %1416
        %v1418 = vsel %vm808, %v1406, -inf
        %1419 = vmax.xlane.f32.xlu0 %v1418
        %v1420 = vpop.xlane.xlu0 %1419
        %v1421 = vsub.f32 %v1334, %v1411
        %v1422 = vsub.f32 %v1358, %v1414
        %v1423 = vsub.f32 %v1382, %v1417
        %v1424 = vsub.f32 %v1406, %v1420
        %v1425 = vmul.f32 %v1421, 1.442695
        %v1426 = vpow.pop %v1425
        %v1427 = vmul.f32 %v1422, 1.442695
        %v1428 = vpow.pop %v1427
        %v1429 = vmul.f32 %v1423, 1.442695
        %v1430 = vpow.pop %v1429
        %v1431 = vmul.f32 %v1424, 1.442695
        %v1432 = vpow.pop %v1431
        %v1433 = vsel %vm808, %v1426, 0.0
        %1434 = vadd.xlane.f32.xlu0 %v1433
        %v1435 = vpop.xlane.xlu0 %1434
        %v1436 = vsel %vm808, %v1428, 0.0
        %1437 = vadd.xlane.f32.xlu0 %v1436
        %v1438 = vpop.xlane.xlu0 %1437
        %v1439 = vsel %vm808, %v1430, 0.0
        %1440 = vadd.xlane.f32.xlu0 %v1439
        %v1441 = vpop.xlane.xlu0 %1440
        %v1442 = vsel %vm808, %v1432, 0.0
        %1443 = vadd.xlane.f32.xlu0 %v1442
        %v1444 = vpop.xlane.xlu0 %1443
        %v1445 = vrcp.pop %v1435
        %v1446 = vrcp.pop %v1438
        %v1447 = vrcp.pop %v1441
        %v1448 = vrcp.pop %v1444
        %v1449 = vmul.f32 %v1426, %v1445
        %v1450 = vmul.f32 %v1428, %v1446
        %v1451 = vmul.f32 %v1430, %v1447
        %v1452 = vmul.f32 %v1432, %v1448
        %v1453 = vpack.c.bf16 %v1449, %v1449
        %v1454 = vpack.c.bf16 %v1450, %v1450
        %v1455 = vpack.c.bf16 %v1451, %v1451
        %v1456 = vpack.c.bf16 %v1452, %v1452
        %1457 = vrot.lane.b32.xlu0 %v1315, 64
        %v1458 = vpop.permute.xlu0 %1457
        %v1460 = vsel %vm808, %v1453, 0
        %v1463 = vsel %vm953, %v1458, 0
        %1465 = vmatpush.bf16.msra.mxu0 0
        %1466 = vmatpush.bf16.msra.mxu0 0
        %1467 = vmatpush.bf16.msra.mxu0 0
        %1468 = vmatpush.bf16.msra.mxu0 0
        %1469 = vmatpush.bf16.msra.mxu0 0
        %1470 = vmatpush.bf16.msra.mxu0 0
        %1471 = vmatpush.bf16.msra.mxu0 0
        %1472 = vmatpush.bf16.msra.mxu0 %v1463
        %1473 = vmatmul.bf16.gmra.mxu0 %v1460
        %v1474 = vpop.f32.mrf.mxu0
        %v1475 = vadd.f32 0.0, %v1474
        %v1476 = vpop.f32.mrf.mxu0
        %1477 = vdwg.mxu0
        %1478 = vrot.lane.b32.xlu0 %v1339, 64
        %v1479 = vpop.permute.xlu0 %1478
        %v1481 = vsel %vm808, %v1454, 0
        %v1484 = vsel %vm953, %v1479, 0
        %1486 = vmatpush.bf16.msra.mxu0 0
        %1487 = vmatpush.bf16.msra.mxu0 0
        %1488 = vmatpush.bf16.msra.mxu0 0
        %1489 = vmatpush.bf16.msra.mxu0 0
        %1490 = vmatpush.bf16.msra.mxu0 0
        %1491 = vmatpush.bf16.msra.mxu0 0
        %1492 = vmatpush.bf16.msra.mxu0 0
        %1493 = vmatpush.bf16.msra.mxu0 %v1484
        %1494 = vmatmul.bf16.gmra.mxu0 %v1481
        %v1495 = vpop.f32.mrf.mxu0
        %v1496 = vadd.f32 0.0, %v1495
        %v1497 = vpop.f32.mrf.mxu0
        %1498 = vdwg.mxu0
        %1499 = vrot.lane.b32.xlu0 %v1363, 64
        %v1500 = vpop.permute.xlu0 %1499
        %v1502 = vsel %vm808, %v1455, 0
        %v1505 = vsel %vm953, %v1500, 0
        %1507 = vmatpush.bf16.msra.mxu0 0
        %1508 = vmatpush.bf16.msra.mxu0 0
        %1509 = vmatpush.bf16.msra.mxu0 0
        %1510 = vmatpush.bf16.msra.mxu0 0
        %1511 = vmatpush.bf16.msra.mxu0 0
        %1512 = vmatpush.bf16.msra.mxu0 0
        %1513 = vmatpush.bf16.msra.mxu0 0
        %1514 = vmatpush.bf16.msra.mxu0 %v1505
        %1515 = vmatmul.bf16.gmra.mxu0 %v1502
        %v1516 = vpop.f32.mrf.mxu0
        %v1517 = vadd.f32 0.0, %v1516
        %v1518 = vpop.f32.mrf.mxu0
        %1519 = vdwg.mxu0
        %1520 = vrot.lane.b32.xlu0 %v1387, 64
        %v1521 = vpop.permute.xlu0 %1520
        %v1523 = vsel %vm808, %v1456, 0
        %v1526 = vsel %vm953, %v1521, 0
        %1528 = vmatpush.bf16.msra.mxu0 0
        %1529 = vmatpush.bf16.msra.mxu0 0
        %1530 = vmatpush.bf16.msra.mxu0 0
        %1531 = vmatpush.bf16.msra.mxu0 0
        %1532 = vmatpush.bf16.msra.mxu0 0
        %1533 = vmatpush.bf16.msra.mxu0 0
        %1534 = vmatpush.bf16.msra.mxu0 0
        %1535 = vmatpush.bf16.msra.mxu0 %v1526
        %1536 = vmatmul.bf16.gmra.mxu0 %v1523
        %v1537 = vpop.f32.mrf.mxu0
        %v1538 = vadd.f32 0.0, %v1537
        %v1539 = vpop.f32.mrf.mxu0
        %1540 = vdwg.mxu0
        %1542 = vrot.lane.b32.xlu0 %v1496, 8
        %v1543 = vpop.permute.xlu0 %1542
        %1546 = vrot.lane.b32.xlu0 %v1517, 16
        %v1547 = vpop.permute.xlu0 %1546
        %1550 = vrot.lane.b32.xlu0 %v1538, 24
        %v1551 = vpop.permute.xlu0 %1550
        %v1553 = vsel %vm808, %v1475, %v1543
        %v1554 = vsel %vm1046, %v1553, %v1547
        %v1555 = vsel %vm1048, %v1554, %v1551
        %v1556 = vpack.c.bf16 %v1555, %v1555
        %s1557 = scalar_lea.vmem %s3, 16
        %v1558 = vld [vmem:[%s1557] sm:$0xf]
        %v1559 = vld [vmem:[%s1557 + $0x4] sm:$0xf]
        %v1560 = vld [vmem:[%s1557 + $0x8] sm:$0xf]
        %v1561 = vld [vmem:[%s1557 + $0xc] sm:$0xf]
        %v1562 = vperm.slane %v308, 3
        %v1567 = vunpack.c.l.b16 %v1558
        %v1568 = vunpack.c.l.b16 %v1559
        %v1569 = vunpack.c.l.b16 %v1560
        %v1570 = vunpack.c.l.b16 %v1561
        %v1571 = vpack.c.b16 %v1568, %v1567
        %v1572 = vpack.c.b16 %v1570, %v1569
        %v1576 = vsel %vm721, %v1556, 0
        %1578 = vmatpush.bf16.msra.mxu0 0
        %1579 = vmatpush.bf16.msra.mxu0 0
        %1580 = vmatpush.bf16.msra.mxu0 0
        %1581 = vmatpush.bf16.msra.mxu0 0
        %1582 = vmatpush.bf16.msra.mxu0 0
        %1583 = vmatpush.bf16.msra.mxu0 0
        %1584 = vmatpush.bf16.msra.mxu0 %v1572
        %1585 = vmatpush.bf16.msra.mxu0 %v1571
        %1586 = vmatmul.bf16.gmra.mxu0 %v1576
        %v1587 = vpop.f32.mrf.mxu0
        %v1588 = vadd.f32 %v1562, %v1587
        %v1589 = vpop.f32.mrf.mxu0
        %1590 = vdwg.mxu0
        %v1591 = vperm.slane %v308, 4
        %v1592 = vmul.f32 %v1591, %v1588
        %v1593 = vadd.f32 %v1237, %v1592
        %v1594 = vsel %vm721, %v1593, 0.0
        %1595 = vadd.xlane.f32.xlu0 %v1594
        %v1596 = vpop.xlane.xlu0 %1595
        %v1597 = vmul.f32 %v1596, %v731
        %v1598 = vsub.f32 %v1593, %v1597
        %v1599 = vmul.f32 %v1598, %v1598
        %v1600 = vsel %vm721, %v1599, 0.0
        %1601 = vadd.xlane.f32.xlu0 %v1600
        %v1602 = vpop.xlane.xlu0 %1601
        %v1603 = vmul.f32 %v1602, %v731
        %v1604 = vadd.f32 %v1603, 1e-06
        %v1605 = vrsqrt.pop %v1604
        %v1606 = vmul.f32 %v1605, %v1604
        %v1607 = vmul.f32 %v1606, %v1605
        %v1608 = vmul.f32 0.5, %v1607
        %v1609 = vsub.f32 1.5, %v1608
        %v1610 = vmul.f32 %v1605, %v1609
        %vm1611 = vweird.f32 %v1604
        %vm1612 = vweird.f32 %v1605
        %vm1613 = vmor %vm1611, %vm1612
        %v1614 = vsel %vm1613, %v1605, %v1610
        %v1615 = vmul.f32 %v1598, %v1614
        %v1616 = vperm.slane %v308, 5
        %v1617 = vmul.f32 %v1615, %v1616
        %v1618 = vperm.slane %v308, 6
        %v1619 = vadd.f32 %v1617, %v1618
        %v1620 = vpack.c.bf16 %v1619, %v1619
        %s1621 = scalar_lea.vmem %s4, 16
        %v1622 = vld [vmem:[%s1621] sm:$0xf]
        %v1623 = vld [vmem:[%s1621 + $0x4] sm:$0xf]
        %v1624 = vld [vmem:[%s1621 + $0x8] sm:$0xf]
        %v1625 = vld [vmem:[%s1621 + $0xc] sm:$0xf]
        %v1626 = vperm.slane %v308, 7
        %v1631 = vunpack.c.l.b16 %v1622
        %v1632 = vunpack.c.l.b16 %v1623
        %v1633 = vunpack.c.l.b16 %v1624
        %v1634 = vunpack.c.l.b16 %v1625
        %v1635 = vpack.c.b16 %v1632, %v1631
        %v1636 = vpack.c.b16 %v1634, %v1633
        %v1640 = vsel %vm721, %v1620, 0
        %1642 = vmatpush.bf16.msra.mxu0 0
        %1643 = vmatpush.bf16.msra.mxu0 0
        %1644 = vmatpush.bf16.msra.mxu0 0
        %1645 = vmatpush.bf16.msra.mxu0 0
        %1646 = vmatpush.bf16.msra.mxu0 0
        %1647 = vmatpush.bf16.msra.mxu0 0
        %1648 = vmatpush.bf16.msra.mxu0 %v1636
        %1649 = vmatpush.bf16.msra.mxu0 %v1635
        %1650 = vmatmul.bf16.gmra.mxu0 %v1640
        %v1651 = vpop.f32.mrf.mxu0
        %v1652 = vadd.f32 %v1626, %v1651
        %v1653 = vpop.f32.mrf.mxu0
        %1654 = vdwg.mxu0
        %v1655 = vmul.f32 %v1652, 0.5
        %v1656 = vmul.f32 %v1652, 0.044715
        %v1657 = vmul.f32 %v1656, %v1652
        %v1658 = vmul.f32 %v1657, %v1652
        %v1659 = vadd.f32 %v1652, %v1658
        %v1660 = vmul.f32 %v1659, 0.7978846
        %v1661 = vtanh.pop %v1660
        %v1662 = vadd.f32 %v1661, 1.0
        %v1663 = vmul.f32 %v1655, %v1662
        %v1664 = vpack.c.bf16 %v1663, %v1663
        %s1665 = scalar_lea.vmem %s5, 64
        %v1666 = vld [vmem:[%s1665] sm:$0xf]
        %v1667 = vld [vmem:[%s1665 + $0x4] sm:$0xf]
        %v1668 = vld [vmem:[%s1665 + $0x8] sm:$0xf]
        %v1669 = vld [vmem:[%s1665 + $0xc] sm:$0xf]
        %v1670 = vld [vmem:[%s1665 + $0x10] sm:$0xf]
        %v1671 = vld [vmem:[%s1665 + $0x14] sm:$0xf]
        %v1672 = vld [vmem:[%s1665 + $0x18] sm:$0xf]
        %v1673 = vld [vmem:[%s1665 + $0x1c] sm:$0xf]
        %v1674 = vld [vmem:[%s1665 + $0x20] sm:$0xf]
        %v1675 = vld [vmem:[%s1665 + $0x24] sm:$0xf]
        %v1676 = vld [vmem:[%s1665 + $0x28] sm:$0xf]
        %v1677 = vld [vmem:[%s1665 + $0x2c] sm:$0xf]
        %v1678 = vld [vmem:[%s1665 + $0x30] sm:$0xf]
        %v1679 = vld [vmem:[%s1665 + $0x34] sm:$0xf]
        %v1680 = vld [vmem:[%s1665 + $0x38] sm:$0xf]
        %v1681 = vld [vmem:[%s1665 + $0x3c] sm:$0xf]
        %v1682 = vperm.slane %v309, 0
        %v1699 = vunpack.c.l.b16 %v1666
        %v1700 = vunpack.c.l.b16 %v1667
        %v1701 = vunpack.c.l.b16 %v1668
        %v1702 = vunpack.c.l.b16 %v1669
        %v1703 = vunpack.c.l.b16 %v1670
        %v1704 = vunpack.c.l.b16 %v1671
        %v1705 = vunpack.c.l.b16 %v1672
        %v1706 = vunpack.c.l.b16 %v1673
        %v1707 = vunpack.c.l.b16 %v1674
        %v1708 = vunpack.c.l.b16 %v1675
        %v1709 = vunpack.c.l.b16 %v1676
        %v1710 = vunpack.c.l.b16 %v1677
        %v1711 = vunpack.c.l.b16 %v1678
        %v1712 = vunpack.c.l.b16 %v1679
        %v1713 = vunpack.c.l.b16 %v1680
        %v1714 = vunpack.c.l.b16 %v1681
        %v1715 = vpack.c.b16 %v1700, %v1699
        %v1716 = vpack.c.b16 %v1702, %v1701
        %v1717 = vpack.c.b16 %v1704, %v1703
        %v1718 = vpack.c.b16 %v1706, %v1705
        %v1719 = vpack.c.b16 %v1708, %v1707
        %v1720 = vpack.c.b16 %v1710, %v1709
        %v1721 = vpack.c.b16 %v1712, %v1711
        %v1722 = vpack.c.b16 %v1714, %v1713
        %1731 = vmatpush.bf16.msra.mxu0 %v1722
        %1732 = vmatpush.bf16.msra.mxu0 %v1721
        %1733 = vmatpush.bf16.msra.mxu0 %v1720
        %1734 = vmatpush.bf16.msra.mxu0 %v1719
        %1735 = vmatpush.bf16.msra.mxu0 %v1718
        %1736 = vmatpush.bf16.msra.mxu0 %v1717
        %1737 = vmatpush.bf16.msra.mxu0 %v1716
        %1738 = vmatpush.bf16.msra.mxu0 %v1715
        %1739 = vmatmul.bf16.gmra.mxu0 %v1664
        %v1740 = vpop.f32.mrf.mxu0
        %v1741 = vadd.f32 %v1682, %v1740
        %v1742 = vpop.f32.mrf.mxu0
        %1743 = vdwg.mxu0
        %v1744 = vperm.slane %v309, 1
        %v1745 = vmul.f32 %v1744, %v1741
        %v1746 = vadd.f32 %v1593, %v1745
        %vm1747 = vcmask 253952
        %v1748 = vsel %vm1747, %v1746, 0.0
        %1749 = vadd.xlane.f32.xlu0 %v1748
        %v1750 = vpop.xlane.xlu0 %1749
        %v1751 = vmul.f32 %v1750, %v731
        %v1752 = vsub.f32 %v1746, %v1751
        %v1753 = vmul.f32 %v1752, %v1752
        %v1754 = vsel %vm1747, %v1753, 0.0
        %1755 = vadd.xlane.f32.xlu0 %v1754
        %v1756 = vpop.xlane.xlu0 %1755
        %v1757 = vmul.f32 %v1756, %v731
        %v1758 = vadd.f32 %v1757, 1e-06
        %v1759 = vrsqrt.pop %v1758
        %v1760 = vmul.f32 %v1759, %v1758
        %v1761 = vmul.f32 %v1760, %v1759
        %v1762 = vmul.f32 0.5, %v1761
        %v1763 = vsub.f32 1.5, %v1762
        %v1764 = vmul.f32 %v1759, %v1763
        %vm1765 = vweird.f32 %v1758
        %vm1766 = vweird.f32 %v1759
        %vm1767 = vmor %vm1765, %vm1766
        %v1768 = vsel %vm1767, %v1759, %v1764
        %v1769 = vmul.f32 %v1752, %v1768
        %v1770 = vmul.f32 %v1769, %v305
        %v1772 = vrot.slane %v305, 1
        %v1774 = vadd.f32 %v1770, %v1772
        %v1775 = vpack.c.bf16 %v1774, %v1774
        %v1776 = vld [vmem:[%s6] sm:$0xf]
        %v1777 = vld [vmem:[%s6 + $0x4] sm:$0xf]
        %v1778 = vld [vmem:[%s6 + $0x8] sm:$0xf]
        %v1779 = vld [vmem:[%s6 + $0xc] sm:$0xf]
        %v1784 = vunpack.c.l.b16 %v1776
        %v1785 = vunpack.c.l.b16 %v1777
        %v1786 = vunpack.c.l.b16 %v1778
        %v1787 = vunpack.c.l.b16 %v1779
        %v1788 = vpack.c.b16 %v1785, %v1784
        %v1789 = vpack.c.b16 %v1787, %v1786
        %v1792 = vrot.slane %v305, 2
        %v1795 = vsel %vm721, %v1775, 0
        %1797 = vmatpush.bf16.msra.mxu0 0
        %1798 = vmatpush.bf16.msra.mxu0 0
        %1799 = vmatpush.bf16.msra.mxu0 0
        %1800 = vmatpush.bf16.msra.mxu0 0
        %1801 = vmatpush.bf16.msra.mxu0 0
        %1802 = vmatpush.bf16.msra.mxu0 0
        %1803 = vmatpush.bf16.msra.mxu0 %v1789
        %1804 = vmatpush.bf16.msra.mxu0 %v1788
        %1805 = vmatmul.bf16.gmra.mxu0 %v1795
        %v1806 = vpop.f32.mrf.mxu0
        %v1807 = vadd.f32 %v1792, %v1806
        %v1808 = vpop.f32.mrf.mxu0
        %1809 = vdwg.mxu0
        %1810 = vst [vmem:[%s297] sm:$0x1] %v1807
        %s1811 = sand.u32 %s203, 1
        %s1812 = scalar_lea.sflag [#allocation3], %s1811
        %s1813 = sand.u32 %s203, 1
        %s1814 = scalar_lea.vmem [#allocation2], %s1813
        // Predicated region
        $region53: #{classifier_forward.1} parent=51 // pred_check
          %p1815 = pneg %p213
        $region54: #{classifier_forward.1} parent=51 // pred_check_branch
          %1817 = sbr.rel (%p1815) target = $region56
        $region55: #{classifier_forward.1} parent=51 // pred_region
          %1819 = vsyncadd %s1812, 0
          %s1820 = scalar_lea.hbm %s8, %s22
          %s1822 = sshll.u32 %s1814, 4
          %s1823 = int_to_ptr.vmem [resolvable:$true] %s1822
          %s1824 = sshll.u32 %s1820, 4
          %s1825 = int_to_ptr.hbm [resolvable:$true] %s1824
          %1827 = dma.vmem_to_hbm [thread:$0]  %s1823, 16, %s1825, %s1812
        $region56: #{classifier_forward.1} parent=51 // pred_fallthru
          _
      $region52: #{classifier_forward.1} parent=5 // pred_fallthru
        _
      %p1828 = scmp.le.s32.totalorder 2, %s17
      // Predicated region
      $region57: #{classifier_forward.1} parent=5 // pred_check
        %p1829 = pneg %p1828
      $region58: #{classifier_forward.1} parent=5 // pred_check_branch
        %1831 = sbr.rel (%p1829) target = $region60
      $region59: #{classifier_forward.1} parent=5 // pred_region
        %s1832 = ssub.s32 %s17, 2
        // Predicated region
        $region61: #{classifier_forward.1} parent=59 // pred_check
          %p1833 = pneg %p219
        $region62: #{classifier_forward.1} parent=59 // pred_check_branch
          %1835 = sbr.rel (%p1833) target = $region64
        $region63: #{classifier_forward.1} parent=59 // pred_region
          %s1836 = sand.u32 %s204, 1
          %s1837 = scalar_lea.sflag [#allocation3], %s1836
          %s1838 = sand.u32 %s204, 1
          %s1839 = scalar_lea.vmem [#allocation2], %s1838
          %1841 = dma.done %s1837, 16
        $region64: #{classifier_forward.1} parent=59 // pred_fallthru
          _
      $region60: #{classifier_forward.1} parent=5 // pred_fallthru
        _
    $region6: #{classifier_forward.1} parent=1 // loop_footer
      %s21 = sadd.s32 1, %s17
    $region7: #{classifier_forward.1} parent=1 // loop_footer_branch
      %16 = sbr.rel target = $region3
    $region8: #{classifier_forward.1} parent=1 // loop_exit
      _
    %1842 = vsyncpa [#allocation3], 1
    %s1843 = scalar_lea.sflag [#allocation3], 1
    %1844 = vsyncpa %s1843, 1

</llo_original>
